<compile_context>
chip_gen: v6e
topology: v6e:2x2x1
jax: 0.10.0
libtpu: 0.0.40
codegen_flags: <defaults>
</compile_context>

<pallas_src>
import math
from functools import partial

import jax
import jax.numpy as jnp
from jax.experimental import pallas as pl
from jax.experimental.pallas import tpu as pltpu

# plain Python float: must NOT be a jnp scalar (a jnp scalar becomes a captured
# constant inside the kernel and fails tracing)
_NEG_FILL = -1e9

_VMEM_CACHE = {}


# ---------------------------------------------------------------------------
# per-generation VMEM budget + tile-size heuristics
# ---------------------------------------------------------------------------
def _vmem_limit_bytes():
    """v5e/v6e have 128 MiB physical VMEM, v7x 64 MiB; keep 25% headroom."""
    if "limit" not in _VMEM_CACHE:
        cap = None
        try:
            cap = getattr(pltpu.get_tpu_info(), "vmem_capacity_bytes", None)
        except Exception:
            cap = None
        if not cap:
            cap = 64 * 1024 * 1024          # assume the smallest (v7x) if unknown
        _VMEM_CACHE["limit"] = int(min(cap * 3 // 4, 112 * 1024 * 1024))
    return _VMEM_CACHE["limit"]


def _round_lanes(n):
    return ((n + 127) // 128) * 128


def _attn_vmem_bytes(h, tq, tk, d_k, d_model, itemsize):
    """Live-set estimate for one flash grid step (double buffering, lane
    padding of the stat scratches, and the f32 s/p/exp temporaries included)."""
    dkp = _round_lanes(d_k)
    io = 2 * itemsize * (h * tq * d_k + 2 * h * tk * d_k)    # q + k + v blocks (x2 buffers)
    io += 2 * itemsize * tq * d_model                        # lane-dense output block (x2)
    io += 2 * tq * tk                                        # int8 mask block (conservative)
    scratch = 4 * (2 * h * tq * 128 + h * tq * dkp)          # m/l stats (lane-padded) + acc
    live = 4 * 3 * h * tq * tk                               # s, p and exp temporaries (f32)
    return io + scratch + live


def _seq_tiles(s, h, d_k, d_model, itemsize):
    """Query/KV tile sizes for the flash kernel (tq == tk)."""
    if s <= 128 or s % 128 != 0:
        # TODO(synk): pad ragged S to a multiple of 128 and mask the tail
        # instead of a whole-sequence tile (VMEM cliff for large ragged S).
        return s, s
    budget = int(_vmem_limit_bytes() * 0.7)
    for t in (1024, 512, 256, 128):        # prefer >=256: feeds the 256-wide MXU
        if s % t == 0 and _attn_vmem_bytes(h, t, t, d_k, d_model, itemsize) <= budget:
            return t, t
    return 128, 128


def _row_tile(m, max_tile=512):
    """Row tile for the linear kernels (must divide m)."""
    if m <= max_tile:
        return m
    for t in (512, 256, 128, 64, 32, 16, 8):
        if m % t == 0:
            return t
    return m   # TODO(synk): pad ragged row counts to a multiple of 8 instead


def _col_tile(d_out, d_in, itemsize):
    """Largest OUT-column tile whose double-buffered (d_in, tn) weight block
    stays within ~1/3 of the VMEM budget (weight never fully resident)."""
    budget = _vmem_limit_bytes() // 3
    for t in (d_out, 4096, 2048, 1024, 512, 256, 128):
        if t <= d_out and d_out % t == 0 and 2 * d_in * t * itemsize <= budget:
            return t
    return d_out


# ---------------------------------------------------------------------------
# row x out-column tiled linear kernel:  out = x @ w   (w pre-transposed)
# ---------------------------------------------------------------------------
def _linear_kernel(x_ref, w_ref, o_ref):
    o_ref[...] = jnp.dot(
        x_ref[...], w_ref[...], preferred_element_type=jnp.float32
    ).astype(o_ref.dtype)


def _linear(x, w_t, out_dtype=jnp.float32):
    """x: (M, IN) @ w_t: (IN, OUT) -> (M, OUT)."""
    m, d_in = x.shape
    d_out = w_t.shape[1]
    itemsize = x.dtype.itemsize
    tm = _row_tile(m)
    tn = _col_tile(d_out, d_in, itemsize)
    out_isize = jnp.dtype(out_dtype).itemsize
    cost = pl.CostEstimate(
        flops=2 * m * d_in * d_out,
        transcendentals=0,
        bytes_accessed=itemsize * (m * d_in * (d_out // tn) + d_in * d_out * (m // tm))
        + out_isize * m * d_out,
    )
    # TODO(synk): also tile d_in (VMEM f32 accumulator + pl.when init/store)
    # for extremely large d_model.
    return pl.pallas_call(
        _linear_kernel,
        out_shape=jax.ShapeDtypeStruct((m, d_out), out_dtype),
        grid_spec=pltpu.PrefetchScalarGridSpec(
            num_scalar_prefetch=0,
            grid=(m // tm, d_out // tn),
            in_specs=[
                pl.BlockSpec((tm, d_in), lambda i, j: (i, 0)),
                pl.BlockSpec((d_in, tn), lambda i, j: (0, j)),
            ],
            out_specs=pl.BlockSpec((tm, tn), lambda i, j: (i, j)),
        ),
        compiler_params=pltpu.CompilerParams(
            dimension_semantics=("parallel", "parallel"),
            vmem_limit_bytes=_vmem_limit_bytes(),
        ),
        cost_estimate=cost,
    )(x, w_t)


# ---------------------------------------------------------------------------
# flash-attention core (online softmax over KV tiles, head-batched matmuls,
# in-kernel head merge -> lane-dense (B, S, d_model) output)
# ---------------------------------------------------------------------------
def _flash_kernel(*refs, has_mask, approx_recip):
    if has_mask:
        occ_ref, q_ref, k_ref, v_ref, mask_ref, o_ref, m_sc, l_sc, acc_sc = refs
    else:
        q_ref, k_ref, v_ref, o_ref, m_sc, l_sc, acc_sc = refs
        occ_ref = mask_ref = None

    kv = pl.program_id(2)

    @pl.when(kv == 0)
    def _init():
        m_sc[...] = jnp.full(m_sc.shape, -jnp.inf, jnp.float32)
        l_sc[...] = jnp.zeros(l_sc.shape, jnp.float32)
        acc_sc[...] = jnp.zeros(acc_sc.shape, jnp.float32)

    def _step():
        # (H, tq, d_k) / (H, tk, d_k); 1/sqrt(d_k) already folded into W_q.
        q = q_ref[0]
        k = k_ref[0]
        v = v_ref[0]
        # head-batched MXU matmul, f32 accumulation
        s = jnp.einsum("hqd,hkd->hqk", q, k, preferred_element_type=jnp.float32)
        if has_mask:
            s = jnp.where(mask_ref[0, 0] == 0, _NEG_FILL, s)
        m_prev = m_sc[...]
        m_new = jnp.maximum(m_prev, s.max(axis=-1, keepdims=True))
        alpha = jnp.exp(m_prev - m_new)
        p = jnp.exp(s - m_new)
        l_sc[...] = alpha * l_sc[...] + p.sum(axis=-1, keepdims=True)
        acc_sc[...] = alpha * acc_sc[...] + jnp.einsum(
            "hqk,hkd->hqd", p.astype(v.dtype), v, preferred_element_type=jnp.float32
        )
        m_sc[...] = m_new

    if has_mask:
        # Skip (q-tile, kv-tile) blocks whose mask is entirely zero (~half of
        # all blocks for a causal mask): no MXU and no exp work at all.
        bi = pl.program_id(0)
        qi = pl.program_id(1)
        pl.when(occ_ref[bi, qi, kv] > 0)(_step)
    else:
        _step()

    @pl.when(kv == pl.num_programs(2) - 1)
    def _finalize():
        l = l_sc[...]
        # Rows whose every key-block was skipped (mask all-zero for the row)
        # have l == 0; emit 0 instead of NaN.
        # TODO(synk): the PyTorch reference yields mean(V) for such degenerate
        # fully-masked rows (uniform softmax over -1e9 scores).
        l = jnp.where(l == 0.0, 1.0, l)
        inv = pl.reciprocal(l, approx=True) if approx_recip else 1.0 / l
        ctx = (acc_sc[...] * inv).astype(o_ref.dtype)           # (H, tq, d_k)
        h, tq, d_k = ctx.shape
        # merge heads in-kernel -> lane-dense (tq, d_model) store (no masked
        # vst on a d_k-wide last dim, no wrapper-side HBM transpose pass)
        o_ref[0] = jnp.transpose(ctx, (1, 0, 2)).reshape(tq, h * d_k)


def _flash_attention(q, k, v, mask_i8, occ, tq, tk, out_dtype, approx_recip):
    """q/k/v: (B, H, S, d_k) -> (B, S, H*d_k) in out_dtype (heads merged)."""
    b, h, s, d_k = q.shape
    d_model = h * d_k
    has_mask = mask_i8 is not None
    grid = (b, s // tq, s // tk)

    if has_mask:
        in_specs = [
            pl.BlockSpec((1, h, tq, d_k), lambda bi, qi, ki, occ_r: (bi, 0, qi, 0)),
            pl.BlockSpec((1, h, tk, d_k), lambda bi, qi, ki, occ_r: (bi, 0, ki, 0)),
            pl.BlockSpec((1, h, tk, d_k), lambda bi, qi, ki, occ_r: (bi, 0, ki, 0)),
            pl.BlockSpec((1, 1, tq, tk), lambda bi, qi, ki, occ_r: (bi, 0, qi, ki)),
        ]
        out_spec = pl.BlockSpec((1, tq, d_model), lambda bi, qi, ki, occ_r: (bi, qi, 0))
        num_prefetch = 1
        args = (occ, q, k, v, mask_i8)
    else:
        in_specs = [
            pl.BlockSpec((1, h, tq, d_k), lambda bi, qi, ki: (bi, 0, qi, 0)),
            pl.BlockSpec((1, h, tk, d_k), lambda bi, qi, ki: (bi, 0, ki, 0)),
            pl.BlockSpec((1, h, tk, d_k), lambda bi, qi, ki: (bi, 0, ki, 0)),
        ]
        out_spec = pl.BlockSpec((1, tq, d_model), lambda bi, qi, ki: (bi, qi, 0))
        num_prefetch = 0
        args = (q, k, v)

    itemsize = q.dtype.itemsize
    out_isize = jnp.dtype(out_dtype).itemsize
    n_q = s // tq
    cost = pl.CostEstimate(
        flops=4 * b * h * s * s * d_k,
        transcendentals=b * h * s * s,
        bytes_accessed=itemsize * b * h * s * d_k * (1 + 2 * n_q)
        + out_isize * b * s * d_model
        + (b * s * s if has_mask else 0),
    )

    kernel = partial(_flash_kernel, has_mask=has_mask, approx_recip=approx_recip)
    return pl.pallas_call(
        kernel,
        out_shape=jax.ShapeDtypeStruct((b, s, d_model), out_dtype),
        grid_spec=pltpu.PrefetchScalarGridSpec(
            num_scalar_prefetch=num_prefetch,
            grid=grid,
            in_specs=in_specs,
            out_specs=out_spec,
            scratch_shapes=[
                pltpu.VMEM((h, tq, 1), jnp.float32),    # running max
                pltpu.VMEM((h, tq, 1), jnp.float32),    # running sum
                pltpu.VMEM((h, tq, d_k), jnp.float32),  # context accumulator
            ],
        ),
        compiler_params=pltpu.CompilerParams(
            # (batch, q-tile) parallel -> both v7x TensorCores get work even at
            # B = 1-2; the kv axis carries the online-softmax recurrence.
            dimension_semantics=("parallel", "parallel", "arbitrary"),
            vmem_limit_bytes=_vmem_limit_bytes(),
        ),
        cost_estimate=cost,
    )(*args)


# ---------------------------------------------------------------------------
# public wrapper (mirrors the PyTorch module forward, eval mode)
# ---------------------------------------------------------------------------
def multi_head_attention(query, w_qkv, w_o, n_heads, mask=None,
                         compute_dtype=jnp.float32):
    """query: (B, S, D); w_qkv: (3D, D); w_o: (D, D); mask: None or broadcastable
    to (B, 1, S, S).  The reference module projects q, k, v from `query` only
    (it ignores its key/value arguments), so they are not taken here."""
    b, s, d_model = query.shape
    d_k = d_model // n_heads
    scale = 1.0 / math.sqrt(d_k)
    itemsize = jnp.dtype(compute_dtype).itemsize
    approx_recip = jnp.dtype(compute_dtype) != jnp.dtype(jnp.float32)

    # One-time weight prep in the wrapper (layout plumbing only, never on-chip):
    # transpose, fold 1/sqrt(d_k) into the Q columns, optional down-cast.
    wqkv_t = jnp.transpose(w_qkv)                        # (D, 3D)
    wqkv_t = wqkv_t.at[:, :d_model].multiply(scale)      # scale folded into W_q
    wqkv_t = wqkv_t.astype(compute_dtype)
    wo_t = jnp.transpose(w_o).astype(compute_dtype)      # (D, D)

    x2d = query.reshape(b * s, d_model).astype(compute_dtype)

    # 1) fused QKV projection (Pallas, row x out-column tiled)
    qkv = _linear(x2d, wqkv_t, out_dtype=compute_dtype)  # (B*S, 3D)

    # 2) head split == chunk(3) + view(B,S,H,d_k) + transpose(1,2)
    # TODO(synk): fuse the head split into the projection out_spec to remove
    # these three O(B*S*D) XLA relayout passes.
    qkv = qkv.reshape(b, s, 3, n_heads, d_k)
    q = jnp.transpose(qkv[:, :, 0], (0, 2, 1, 3))        # (B, H, S, d_k)
    k = jnp.transpose(qkv[:, :, 1], (0, 2, 1, 3))
    v = jnp.transpose(qkv[:, :, 2], (0, 2, 1, 3))

    # 3) flash attention core (Pallas).  Mask is optional; when present it is
    #    int8 plus a scalar-prefetched per-block occupancy table so that
    #    fully-masked (q-tile, kv-tile) blocks are skipped outright.
    tq, tk = _seq_tiles(s, n_heads, d_k, d_model, itemsize)
    mask_i8 = None
    occ = None
    if mask is not None:
        mask_i8 = (jnp.broadcast_to(mask, (b, 1, s, s)) != 0).astype(jnp.int8)
        occ = jnp.any(
            mask_i8.reshape(b, 1, s // tq, tq, s // tk, tk) != 0, axis=(3, 5)
        )[:, 0].astype(jnp.int32)                        # (B, n_q_tiles, n_kv_tiles)

    # heads merged inside the kernel -> (B, S, D), lane-dense, compute_dtype
    ctx = _flash_attention(q, k, v, mask_i8, occ, tq, tk,
                           out_dtype=compute_dtype, approx_recip=approx_recip)

    # 4) output projection (Pallas); the reshape below is a no-op view
    out = _linear(ctx.reshape(b * s, d_model), wo_t, out_dtype=jnp.float32)
    return out.reshape(b, s, d_model)


# ---------------------------------------------------------------------------
# pure-JAX reference (mirrors the PyTorch forward in eval mode)
# ---------------------------------------------------------------------------
def _reference_mha(query, w_qkv, w_o, n_heads, mask=None):
    b, s, d_model = query.shape
    d_k = d_model // n_heads
    scale = 1.0 / math.sqrt(d_k)
    qkv = query @ w_qkv.T
    q, k, v = jnp.split(qkv, 3, axis=-1)

    def heads(t):
        return t.reshape(b, s, n_heads, d_k).transpose(0, 2, 1, 3)

    qh, kh, vh = heads(q), heads(k), heads(v)
    scores = jnp.einsum("bhqd,bhkd->bhqk", qh, kh) * scale
    if mask is not None:
        scores = jnp.where(mask == 0, -1e9, scores)
    attn = jax.nn.softmax(scores, axis=-1)
    ctx = jnp.einsum("bhqk,bhkd->bhqd", attn, vh)
    ctx = ctx.transpose(0, 2, 1, 3).reshape(b, s, d_model)
    return ctx @ w_o.T


if __name__ == "__main__":
    # Small shapes: batch=2, seq=8, d_model=32, n_heads=4 (d_k=8)
    B, S, D, H = 2, 8, 32, 4

    key = jax.random.PRNGKey(0)
    k_x, k_wqkv, k_wo = jax.random.split(key, 3)

    x = jax.random.normal(k_x, (B, S, D), dtype=jnp.float32)
    w_qkv = jax.random.normal(k_wqkv, (3 * D, D), dtype=jnp.float32) * 0.02
    w_o = jax.random.normal(k_wo, (D, D), dtype=jnp.float32) * 0.02

    mha = jax.jit(multi_head_attention, static_argnames=("n_heads", "compute_dtype"))

    # --- f32, unmasked path (no mask stream / occupancy table at all) ---------
    out = jax.block_until_ready(mha(x, w_qkv, w_o, n_heads=H))
    ref = _reference_mha(x, w_qkv, w_o, H)
    assert out.shape == (B, S, D)
    assert jnp.allclose(out, ref, atol=5e-4, rtol=5e-3), "unmasked mismatch"

    # --- f32, masked (causal) path ---------------------------------------------
    causal = jnp.tril(jnp.ones((S, S), dtype=jnp.float32))[None, None]  # (1,1,S,S)
    out_m = jax.block_until_ready(mha(x, w_qkv, w_o, n_heads=H, mask=causal))
    ref_m = _reference_mha(x, w_qkv, w_o, H, mask=causal)
    assert jnp.allclose(out_m, ref_m, atol=5e-4, rtol=5e-3), "masked mismatch"

    # --- bf16 MXU path (f32 accumulation + f32 softmax stats), loose tolerance -
    out_bf = jax.block_until_ready(
        mha(x, w_qkv, w_o, n_heads=H, compute_dtype=jnp.bfloat16)
    )
    assert jnp.allclose(out_bf, ref, atol=1e-2, rtol=5e-2), "bf16 mismatch"

    print("KERNEL_OK")
</pallas_src>

<mosaic_0001>
module attributes {stable_mosaic.version = 11 : i64} {
  func.func @_linear_kernel(%arg0: i32, %arg1: i32, %arg2: memref<16x32xf32, #tpu.memory_space<vmem>>, %arg3: memref<32x96xf32, #tpu.memory_space<vmem>>, %arg4: memref<16x96xf32, #tpu.memory_space<vmem>>) attributes {dimension_semantics = [#tpu.dimension_semantics<parallel>, #tpu.dimension_semantics<parallel>], iteration_bounds = array<i64: 1, 1>, scalar_prefetch = 0 : i64, scratch_operands = 0 : i64, tpu.core_type = #tpu.core_type<tc>, window_params = [{transform_indices = @transform_0, window_bounds = array<i64: 16, 32>}, {transform_indices = @transform_1, window_bounds = array<i64: 32, 96>}, {transform_indices = @transform_2, window_bounds = array<i64: 16, 96>}]} {
    %c0 = arith.constant 0 : index
    %c0_0 = arith.constant 0 : index
    %0 = vector.load %arg2[%c0, %c0_0] : memref<16x32xf32, #tpu.memory_space<vmem>>, vector<16x32xf32>
    %c0_1 = arith.constant 0 : index
    %c0_2 = arith.constant 0 : index
    %1 = vector.load %arg3[%c0_1, %c0_2] : memref<32x96xf32, #tpu.memory_space<vmem>>, vector<32x96xf32>
    %cst = arith.constant dense<0.000000e+00> : vector<16x96xf32>
    %2 = tpu.matmul %0, %1, %cst {dimension_numbers = #tpu.dot_dimension_numbers<[1], [0], [0], [1], [0, 0, 1, 1], [], []>} : vector<16x32xf32>, vector<32x96xf32>, vector<16x96xf32> -> vector<16x96xf32>
    %c0_3 = arith.constant 0 : index
    %c0_4 = arith.constant 0 : index
    %3 = vector.load %arg4[%c0_3, %c0_4] : memref<16x96xf32, #tpu.memory_space<vmem>>, vector<16x96xf32>
    tpu.vector_store %arg4[%c0_3, %c0_4], %2 {strides = array<i32>} : memref<16x96xf32, #tpu.memory_space<vmem>>, vector<16x96xf32>,
    return
  }
  func.func @transform_0(%arg0: i32, %arg1: i32) -> (i32, i32) {
    %c0_i32 = arith.constant 0 : i32
    %c0_i32_0 = arith.constant 0 : i32
    return %arg0, %c0_i32 : i32, i32
  }
  func.func @transform_1(%arg0: i32, %arg1: i32) -> (i32, i32) {
    %c0_i32 = arith.constant 0 : i32
    %c0_i32_0 = arith.constant 0 : i32
    return %c0_i32, %arg1 : i32, i32
  }
  func.func @transform_2(%arg0: i32, %arg1: i32) -> (i32, i32) {
    %c0_i32 = arith.constant 0 : i32
    return %arg0, %arg1 : i32, i32
  }
}

module attributes {stable_mosaic.version = 11 : i64} {
  func.func @_linear_kernel(%arg0: i32, %arg1: i32, %arg2: memref<16x32xf32, #tpu.memory_space<vmem>>, %arg3: memref<32x32xf32, #tpu.memory_space<vmem>>, %arg4: memref<16x32xf32, #tpu.memory_space<vmem>>) attributes {dimension_semantics = [#tpu.dimension_semantics<parallel>, #tpu.dimension_semantics<parallel>], iteration_bounds = array<i64: 1, 1>, scalar_prefetch = 0 : i64, scratch_operands = 0 : i64, tpu.core_type = #tpu.core_type<tc>, window_params = [{transform_indices = @transform_0, window_bounds = array<i64: 16, 32>}, {transform_indices = @transform_1, window_bounds = array<i64: 32, 32>}, {transform_indices = @transform_2, window_bounds = array<i64: 16, 32>}]} {
    %c0 = arith.constant 0 : index
    %c0_0 = arith.constant 0 : index
    %0 = vector.load %arg2[%c0, %c0_0] : memref<16x32xf32, #tpu.memory_space<vmem>>, vector<16x32xf32>
    %c0_1 = arith.constant 0 : index
    %c0_2 = arith.constant 0 : index
    %1 = vector.load %arg3[%c0_1, %c0_2] : memref<32x32xf32, #tpu.memory_space<vmem>>, vector<32x32xf32>
    %cst = arith.constant dense<0.000000e+00> : vector<16x32xf32>
    %2 = tpu.matmul %0, %1, %cst {dimension_numbers = #tpu.dot_dimension_numbers<[1], [0], [0], [1], [0, 0, 1, 1], [], []>} : vector<16x32xf32>, vector<32x32xf32>, vector<16x32xf32> -> vector<16x32xf32>
    %c0_3 = arith.constant 0 : index
    %c0_4 = arith.constant 0 : index
    %3 = vector.load %arg4[%c0_3, %c0_4] : memref<16x32xf32, #tpu.memory_space<vmem>>, vector<16x32xf32>
    tpu.vector_store %arg4[%c0_3, %c0_4], %2 {strides = array<i32>} : memref<16x32xf32, #tpu.memory_space<vmem>>, vector<16x32xf32>,
    return
  }
  func.func @transform_0(%arg0: i32, %arg1: i32) -> (i32, i32) {
    %c0_i32 = arith.constant 0 : i32
    %c0_i32_0 = arith.constant 0 : i32
    return %arg0, %c0_i32 : i32, i32
  }
  func.func @transform_1(%arg0: i32, %arg1: i32) -> (i32, i32) {
    %c0_i32 = arith.constant 0 : i32
    %c0_i32_0 = arith.constant 0 : i32
    return %c0_i32, %arg1 : i32, i32
  }
  func.func @transform_2(%arg0: i32, %arg1: i32) -> (i32, i32) {
    %c0_i32 = arith.constant 0 : i32
    return %arg0, %arg1 : i32, i32
  }
}

module attributes {stable_mosaic.version = 11 : i64} {
  func.func @_flash_kernel(%arg0: i32, %arg1: i32, %arg2: i32, %arg3: memref<1x4x8x8xf32, #tpu.memory_space<vmem>>, %arg4: memref<1x4x8x8xf32, #tpu.memory_space<vmem>>, %arg5: memref<1x4x8x8xf32, #tpu.memory_space<vmem>>, %arg6: memref<1x8x32xf32, #tpu.memory_space<vmem>>, %arg7: memref<4x8x1xf32, #tpu.memory_space<vmem>>, %arg8: memref<4x8x1xf32, #tpu.memory_space<vmem>>, %arg9: memref<4x8x8xf32, #tpu.memory_space<vmem>>) attributes {dimension_semantics = [#tpu.dimension_semantics<parallel>, #tpu.dimension_semantics<parallel>, #tpu.dimension_semantics<arbitrary>], iteration_bounds = array<i64: 2, 1, 1>, scalar_prefetch = 0 : i64, scratch_operands = 3 : i64, tpu.core_type = #tpu.core_type<tc>, window_params = [{transform_indices = @transform_0, window_bounds = array<i64: 1, 4, 8, 8>}, {transform_indices = @transform_1, window_bounds = array<i64: 1, 4, 8, 8>}, {transform_indices = @transform_2, window_bounds = array<i64: 1, 4, 8, 8>}, {transform_indices = @transform_3, window_bounds = array<i64: 1, 8, 32>}]} {
    %c0_i32 = arith.constant 0 : i32
    %0 = arith.cmpi eq, %arg2, %c0_i32 : i32
    %1 = arith.extui %0 : i1 to i32
    %c0_i32_0 = arith.constant 0 : i32
    %2 = arith.cmpi ne, %1, %c0_i32_0 : i32
    scf.if %2 {
      %cst_35 = arith.constant 0xFF800000 : f32
      %35 = vector.broadcast %cst_35 : f32 to vector<4x8x1xf32>
      %c0_36 = arith.constant 0 : index
      %c0_37 = arith.constant 0 : index
      %c0_38 = arith.constant 0 : index
      %36 = vector.load %arg7[%c0_36, %c0_37, %c0_38] : memref<4x8x1xf32, #tpu.memory_space<vmem>>, vector<4x8x1xf32>
      tpu.vector_store %arg7[%c0_36, %c0_37, %c0_38], %35 {strides = array<i32>} : memref<4x8x1xf32, #tpu.memory_space<vmem>>, vector<4x8x1xf32>,
      %cst_39 = arith.constant 0.000000e+00 : f32
      %37 = vector.broadcast %cst_39 : f32 to vector<4x8x1xf32>
      %c0_40 = arith.constant 0 : index
      %c0_41 = arith.constant 0 : index
      %c0_42 = arith.constant 0 : index
      %38 = vector.load %arg8[%c0_40, %c0_41, %c0_42] : memref<4x8x1xf32, #tpu.memory_space<vmem>>, vector<4x8x1xf32>
      tpu.vector_store %arg8[%c0_40, %c0_41, %c0_42], %37 {strides = array<i32>} : memref<4x8x1xf32, #tpu.memory_space<vmem>>, vector<4x8x1xf32>,
      %cst_43 = arith.constant 0.000000e+00 : f32
      %39 = vector.broadcast %cst_43 : f32 to vector<4x8x8xf32>
      %c0_44 = arith.constant 0 : index
      %c0_45 = arith.constant 0 : index
      %c0_46 = arith.constant 0 : index
      %40 = vector.load %arg9[%c0_44, %c0_45, %c0_46] : memref<4x8x8xf32, #tpu.memory_space<vmem>>, vector<4x8x8xf32>
      tpu.vector_store %arg9[%c0_44, %c0_45, %c0_46], %39 {strides = array<i32>} : memref<4x8x8xf32, #tpu.memory_space<vmem>>, vector<4x8x8xf32>,
    } else {
    }
    %c0 = arith.constant 0 : index
    %c0_1 = arith.constant 0 : index
    %c0_2 = arith.constant 0 : index
    %c0_3 = arith.constant 0 : index
    %3 = vector.load %arg3[%c0, %c0_1, %c0_2, %c0_3] : memref<1x4x8x8xf32, #tpu.memory_space<vmem>>, vector<1x4x8x8xf32>
    %4 = vector.shape_cast %3 : vector<1x4x8x8xf32> to vector<4x8x8xf32>
    %c0_4 = arith.constant 0 : index
    %c0_5 = arith.constant 0 : index
    %c0_6 = arith.constant 0 : index
    %c0_7 = arith.constant 0 : index
    %5 = vector.load %arg4[%c0_4, %c0_5, %c0_6, %c0_7] : memref<1x4x8x8xf32, #tpu.memory_space<vmem>>, vector<1x4x8x8xf32>
    %6 = vector.shape_cast %5 : vector<1x4x8x8xf32> to vector<4x8x8xf32>
    %c0_8 = arith.constant 0 : index
    %c0_9 = arith.constant 0 : index
    %c0_10 = arith.constant 0 : index
    %c0_11 = arith.constant 0 : index
    %7 = vector.load %arg5[%c0_8, %c0_9, %c0_10, %c0_11] : memref<1x4x8x8xf32, #tpu.memory_space<vmem>>, vector<1x4x8x8xf32>
    %8 = vector.shape_cast %7 : vector<1x4x8x8xf32> to vector<4x8x8xf32>
    "tpu.trace_start"() <{level = 10 : i32, message = "hqd,hkd->hqk"}> : () -> ()
    %cst = arith.constant dense<0.000000e+00> : vector<4x8x8xf32>
    %9 = tpu.matmul %4, %6, %cst {dimension_numbers = #tpu.dot_dimension_numbers<[2], [2], [1], [1], [0, 0, 0, 1, 1, 1], [0], [0]>} : vector<4x8x8xf32>, vector<4x8x8xf32>, vector<4x8x8xf32> -> vector<4x8x8xf32>
    "tpu.trace_stop"() : () -> ()
    %c0_12 = arith.constant 0 : index
    %c0_13 = arith.constant 0 : index
    %c0_14 = arith.constant 0 : index
    %10 = vector.load %arg7[%c0_12, %c0_13, %c0_14] : memref<4x8x1xf32, #tpu.memory_space<vmem>>, vector<4x8x1xf32>
    %cst_15 = arith.constant dense<0xFF800000> : vector<4x8xf32>
    %11 = vector.multi_reduction <maximumf>, %9, %cst_15 [2] : vector<4x8x8xf32> to vector<4x8xf32>
    %12 = vector.shape_cast %11 : vector<4x8xf32> to vector<4x8x1xf32>
    %13 = arith.maximumf %10, %12 : vector<4x8x1xf32>
    %14 = arith.subf %10, %13 : vector<4x8x1xf32>
    %15 = math.exp %14 : vector<4x8x1xf32>
    %16 = vector.broadcast %13 : vector<4x8x1xf32> to vector<4x8x8xf32>
    %17 = arith.subf %9, %16 : vector<4x8x8xf32>
    %18 = math.exp %17 : vector<4x8x8xf32>
    %c0_16 = arith.constant 0 : index
    %c0_17 = arith.constant 0 : index
    %c0_18 = arith.constant 0 : index
    %19 = vector.load %arg8[%c0_16, %c0_17, %c0_18] : memref<4x8x1xf32, #tpu.memory_space<vmem>>, vector<4x8x1xf32>
    %20 = arith.mulf %15, %19 : vector<4x8x1xf32>
    %cst_19 = arith.constant dense<0.000000e+00> : vector<4x8xf32>
    %21 = vector.multi_reduction <add>, %18, %cst_19 [2] : vector<4x8x8xf32> to vector<4x8xf32>
    %22 = vector.shape_cast %21 : vector<4x8xf32> to vector<4x8x1xf32>
    %23 = arith.addf %20, %22 : vector<4x8x1xf32>
    %c0_20 = arith.constant 0 : index
    %c0_21 = arith.constant 0 : index
    %c0_22 = arith.constant 0 : index
    %24 = vector.load %arg8[%c0_20, %c0_21, %c0_22] : memref<4x8x1xf32, #tpu.memory_space<vmem>>, vector<4x8x1xf32>
    tpu.vector_store %arg8[%c0_20, %c0_21, %c0_22], %23 {strides = array<i32>} : memref<4x8x1xf32, #tpu.memory_space<vmem>>, vector<4x8x1xf32>,
    %c0_23 = arith.constant 0 : index
    %c0_24 = arith.constant 0 : index
    %c0_25 = arith.constant 0 : index
    %25 = vector.load %arg9[%c0_23, %c0_24, %c0_25] : memref<4x8x8xf32, #tpu.memory_space<vmem>>, vector<4x8x8xf32>
    %26 = vector.broadcast %15 : vector<4x8x1xf32> to vector<4x8x8xf32>
    %27 = arith.mulf %26, %25 : vector<4x8x8xf32>
    "tpu.trace_start"() <{level = 10 : i32, message = "hqk,hkd->hqd"}> : () -> ()
    %cst_26 = arith.constant dense<0.000000e+00> : vector<4x8x8xf32>
    %28 = tpu.matmul %18, %8, %cst_26 {dimension_numbers = #tpu.dot_dimension_numbers<[2], [1], [1], [2], [0, 0, 0, 1, 1, 2], [0], [0]>} : vector<4x8x8xf32>, vector<4x8x8xf32>, vector<4x8x8xf32> -> vector<4x8x8xf32>
    "tpu.trace_stop"() : () -> ()
    %29 = arith.addf %27, %28 : vector<4x8x8xf32>
    %c0_27 = arith.constant 0 : index
    %c0_28 = arith.constant 0 : index
    %c0_29 = arith.constant 0 : index
    %30 = vector.load %arg9[%c0_27, %c0_28, %c0_29] : memref<4x8x8xf32, #tpu.memory_space<vmem>>, vector<4x8x8xf32>
    tpu.vector_store %arg9[%c0_27, %c0_28, %c0_29], %29 {strides = array<i32>} : memref<4x8x8xf32, #tpu.memory_space<vmem>>, vector<4x8x8xf32>,
    %c0_30 = arith.constant 0 : index
    %c0_31 = arith.constant 0 : index
    %c0_32 = arith.constant 0 : index
    %31 = vector.load %arg7[%c0_30, %c0_31, %c0_32] : memref<4x8x1xf32, #tpu.memory_space<vmem>>, vector<4x8x1xf32>
    tpu.vector_store %arg7[%c0_30, %c0_31, %c0_32], %13 {strides = array<i32>} : memref<4x8x1xf32, #tpu.memory_space<vmem>>, vector<4x8x1xf32>,
    %c0_i32_33 = arith.constant 0 : i32
    %32 = arith.cmpi eq, %arg2, %c0_i32_33 : i32
    %33 = arith.extui %32 : i1 to i32
    %c0_i32_34 = arith.constant 0 : i32
    %34 = arith.cmpi ne, %33, %c0_i32_34 : i32
    scf.if %34 {
      %c0_35 = arith.constant 0 : index
      %c0_36 = arith.constant 0 : index
      %c0_37 = arith.constant 0 : index
      %35 = vector.load %arg8[%c0_35, %c0_36, %c0_37] : memref<4x8x1xf32, #tpu.memory_space<vmem>>, vector<4x8x1xf32>
      %cst_38 = arith.constant 0.000000e+00 : f32
      %36 = vector.broadcast %cst_38 : f32 to vector<4x8x1xf32>
      %37 = arith.cmpf oeq, %35, %36 : vector<4x8x1xf32>
      %cst_39 = arith.constant 1.000000e+00 : f32
      %38 = vector.broadcast %cst_39 : f32 to vector<4x8x1xf32>
      %39 = arith.select %37, %38, %35 : vector<4x8x1xi1>, vector<4x8x1xf32>
      %cst_40 = arith.constant 1.000000e+00 : f32
      %40 = vector.broadcast %cst_40 : f32 to vector<4x8x1xf32>
      %41 = arith.divf %40, %39 : vector<4x8x1xf32>
      %c0_41 = arith.constant 0 : index
      %c0_42 = arith.constant 0 : index
      %c0_43 = arith.constant 0 : index
      %42 = vector.load %arg9[%c0_41, %c0_42, %c0_43] : memref<4x8x8xf32, #tpu.memory_space<vmem>>, vector<4x8x8xf32>
      %43 = vector.broadcast %41 : vector<4x8x1xf32> to vector<4x8x8xf32>
      %44 = arith.mulf %42, %43 : vector<4x8x8xf32>
      %45 = tpu.transpose %44, [1, 0, 2] : vector<4x8x8xf32> -> vector<8x4x8xf32>
      %46 = vector.shape_cast %45 : vector<8x4x8xf32> to vector<8x32xf32>
      %c0_44 = arith.constant 0 : index
      %c0_45 = arith.constant 0 : index
      %c0_46 = arith.constant 0 : index
      %47 = vector.load %arg6[%c0_44, %c0_45, %c0_46] : memref<1x8x32xf32, #tpu.memory_space<vmem>>, vector<1x8x32xf32>
      %48 = vector.shape_cast %47 : vector<1x8x32xf32> to vector<8x32xf32>
      %49 = vector.shape_cast %46 : vector<8x32xf32> to vector<1x8x32xf32>
      tpu.vector_store %arg6[%c0_44, %c0_45, %c0_46], %49 {strides = array<i32>} : memref<1x8x32xf32, #tpu.memory_space<vmem>>, vector<1x8x32xf32>,
    } else {
    }
    return
  }
  func.func @transform_0(%arg0: i32, %arg1: i32, %arg2: i32) -> (i32, i32, i32, i32) {
    %c0_i32 = arith.constant 0 : i32
    %c0_i32_0 = arith.constant 0 : i32
    %c0_i32_1 = arith.constant 0 : i32
    return %arg0, %c0_i32, %arg1, %c0_i32_0 : i32, i32, i32, i32
  }
  func.func @transform_1(%arg0: i32, %arg1: i32, %arg2: i32) -> (i32, i32, i32, i32) {
    %c0_i32 = arith.constant 0 : i32
    %c0_i32_0 = arith.constant 0 : i32
    %c0_i32_1 = arith.constant 0 : i32
    return %arg0, %c0_i32, %arg2, %c0_i32_0 : i32, i32, i32, i32
  }
  func.func @transform_2(%arg0: i32, %arg1: i32, %arg2: i32) -> (i32, i32, i32, i32) {
    %c0_i32 = arith.constant 0 : i32
    %c0_i32_0 = arith.constant 0 : i32
    %c0_i32_1 = arith.constant 0 : i32
    return %arg0, %c0_i32, %arg2, %c0_i32_0 : i32, i32, i32, i32
  }
  func.func @transform_3(%arg0: i32, %arg1: i32, %arg2: i32) -> (i32, i32, i32) {
    %c0_i32 = arith.constant 0 : i32
    %c0_i32_0 = arith.constant 0 : i32
    return %arg0, %arg1, %c0_i32 : i32, i32, i32
  }
}

</mosaic_0001>

<llo_original>
// kernel: multi_head_attention.5
$region0: #{multi_head_attention.5}
  #allocation0 [shape = 'u32[]', space=smem, size = 0x4, offset = 0x4, fixed_abs, tag = 'smem constant byte address 0x4 - core index']
  #allocation1 [shape = 'u32[144,128]{1,0:T(1,128)}', space=vmem, size = 0x12000, scoped, tag = 'internal scratch']
  %s0 = inlined_call_operand.vmem [shape: f32[16,32], index: 0, kind: input, shape index: {}]
  %s1 = inlined_call_operand.vmem [shape: f32[32,32], index: 1, kind: input, shape index: {}]
  %s2 = inlined_call_operand.hbm [shape: f32[16,32], index: 2, kind: output, shape index: {}]
  %s3 = sld [smem:[#allocation0]]
  $region18: #{multi_head_attention.5} parent=0
    _
  %s5 = ssub.s32 1, %s3
  %s6 = scalar_select 0, %s5, %s3
  $region1: #{multi_head_attention.5} parent=0
    #allocation2 [shape = 'u8[8192]{0}', space=vmem, size = 0x2000, scoped, tag = 'output window, operand 0, single buffered']
    #allocation3 [shape = 's32[1]{0}', space=sflag, size = 0x4, scoped, tag = 'scoped memory for multi_head_attention.5']
    %7 = vsyncpa [#allocation3], 0
    // Predicated region
    $region2: #{multi_head_attention.5} parent=1 // pred_check
      _
    $region3: #{multi_head_attention.5} parent=1 // pred_check_branch
      %9 = sbr.rel (0) target = $region5
    $region4: #{multi_head_attention.5} parent=1 // pred_region
      _
    $region5: #{multi_head_attention.5} parent=1 // pred_fallthru
      _
    // Predicated region
    $region6: #{multi_head_attention.5} parent=1 // pred_check
      _
    $region7: #{multi_head_attention.5} parent=1 // pred_check_branch
      %11 = sbr.rel (0) target = $region9
    $region8: #{multi_head_attention.5} parent=1 // pred_region
      _
    $region9: #{multi_head_attention.5} parent=1 // pred_fallthru
      _
    %v12 = vld [vmem:[%s0] sm:$0xff]
    %v13 = vld [vmem:[%s0 + $0x8] sm:$0xff]
    %v14 = vld [vmem:[%s1] sm:$0xff]
    %v15 = vld [vmem:[%s1 + $0x8] sm:$0xff]
    %v16 = vld [vmem:[%s1 + $0x10] sm:$0xff]
    %v17 = vld [vmem:[%s1 + $0x18] sm:$0xff]
    %vm18 = vcmask 261120
    %v20 = vsel %vm18, %v12, 0
    %v23 = vsel %vm18, %v13, 0
    %25 = vmatprep.subr.mxu0 0.0
    %26 = vmatpush1.msra.mxu0 0.0
    %27 = vmatprep.subr.mxu0 0.0
    %28 = vmatpush1.msra.mxu0 0.0
    %29 = vmatprep.subr.mxu0 0.0
    %30 = vmatpush1.msra.mxu0 0.0
    %31 = vmatprep.subr.mxu0 0.0
    %32 = vmatpush1.msra.mxu0 0.0
    %33 = vmatprep.subr.mxu0 0.0
    %34 = vmatpush1.msra.mxu0 0.0
    %35 = vmatprep.subr.mxu0 0.0
    %36 = vmatpush1.msra.mxu0 0.0
    %37 = vmatprep.subr.mxu0 0.0
    %38 = vmatpush1.msra.mxu0 0.0
    %39 = vmatprep.subr.mxu0 0.0
    %40 = vmatpush1.msra.mxu0 0.0
    %41 = vmatprep.subr.mxu0 0.0
    %42 = vmatpush1.msra.mxu0 0.0
    %43 = vmatprep.subr.mxu0 0.0
    %44 = vmatpush1.msra.mxu0 0.0
    %45 = vmatprep.subr.mxu0 0.0
    %46 = vmatpush1.msra.mxu0 0.0
    %47 = vmatprep.subr.mxu0 0.0
    %48 = vmatpush1.msra.mxu0 0.0
    %49 = vmatprep.subr.mxu0 0.0
    %50 = vmatpush1.msra.mxu0 %v17
    %51 = vmatprep.subr.mxu0 0.0
    %52 = vmatpush1.msra.mxu0 %v16
    %53 = vmatprep.subr.mxu0 0.0
    %54 = vmatpush1.msra.mxu0 %v15
    %55 = vmatprep.subr.mxu0 0.0
    %56 = vmatpush1.msra.mxu0 %v14
    %57 = vmatprep.subr.mxu0 0.0
    %58 = vmatpush2.msra.mxu0 0.0
    %59 = vmatprep.subr.mxu0 0.0
    %60 = vmatpush2.msra.mxu0 0.0
    %61 = vmatprep.subr.mxu0 0.0
    %62 = vmatpush2.msra.mxu0 0.0
    %63 = vmatprep.subr.mxu0 0.0
    %64 = vmatpush2.msra.mxu0 0.0
    %65 = vmatprep.subr.mxu0 0.0
    %66 = vmatpush2.msra.mxu0 0.0
    %67 = vmatprep.subr.mxu0 0.0
    %68 = vmatpush2.msra.mxu0 0.0
    %69 = vmatprep.subr.mxu0 0.0
    %70 = vmatpush2.msra.mxu0 0.0
    %71 = vmatprep.subr.mxu0 0.0
    %72 = vmatpush2.msra.mxu0 0.0
    %73 = vmatprep.subr.mxu0 0.0
    %74 = vmatpush2.msra.mxu0 0.0
    %75 = vmatprep.subr.mxu0 0.0
    %76 = vmatpush2.msra.mxu0 0.0
    %77 = vmatprep.subr.mxu0 0.0
    %78 = vmatpush2.msra.mxu0 0.0
    %79 = vmatprep.subr.mxu0 0.0
    %80 = vmatpush2.msra.mxu0 0.0
    %81 = vmatprep.subr.mxu0 0.0
    %82 = vmatpush2.msra.mxu0 0.0
    %83 = vmatprep.subr.mxu0 0.0
    %84 = vmatpush2.msra.mxu0 0.0
    %85 = vmatprep.subr.mxu0 0.0
    %86 = vmatpush2.msra.mxu0 0.0
    %87 = vmatprep.subr.mxu0 0.0
    %88 = vmatpush2.msra.mxu0 0.0
    %89 = vmatprep.mubr.f32.mxu0 0.0
    %90 = vmatmul.mubr.f32.gmra.mxu0 %v20
    %v91 = vpop.f32.mrf.mxu0
    %v92 = vadd.f32 0.0, %v91
    %v93 = vpop.f32.mrf.mxu0
    %94 = vmatprep.mubr.f32.mxu0 0.0
    %95 = vmatmul.mubr.f32.gmra.mxu0 %v23
    %v96 = vpop.f32.mrf.mxu0
    %v97 = vadd.f32 0.0, %v96
    %v98 = vpop.f32.mrf.mxu0
    %99 = vdwg.mxu0
    %100 = vst.msk [vmem:[#allocation2] sm:$0xff] %vm18, %v92
    %101 = vst.msk [vmem:[#allocation2 + $0x8] sm:$0xff] %vm18, %v97
    // Predicated region
    $region10: #{multi_head_attention.5} parent=1 // pred_check
      _
    $region11: #{multi_head_attention.5} parent=1 // pred_check_branch
      %103 = sbr.rel (0) target = $region13
    $region12: #{multi_head_attention.5} parent=1 // pred_region
      %s105 = ssub.s32 256, 256
      %106 = vsyncadd [#allocation3], %s105
      %s107 = sshll.u32 [#allocation2], 4
      %s108 = int_to_ptr.vmem [resolvable:$true] %s107
      %113 = dma.vmem_to_hbm [thread:$0]  %s108, 256, %s2, [#allocation3], 128, 128, 8
    $region13: #{multi_head_attention.5} parent=1 // pred_fallthru
      _
    // Predicated region
    $region14: #{multi_head_attention.5} parent=1 // pred_check
      _
    $region15: #{multi_head_attention.5} parent=1 // pred_check_branch
      %115 = sbr.rel (0) target = $region17
    $region16: #{multi_head_attention.5} parent=1 // pred_region
      %116 = dma.done [#allocation3], 256
    $region17: #{multi_head_attention.5} parent=1 // pred_fallthru
      _
    %117 = vsyncpa [#allocation3], 1

// kernel: multi_head_attention.3
$region0: #{multi_head_attention.3}
  #allocation0 [shape = 'u32[]', space=smem, size = 0x4, offset = 0x4, fixed_abs, tag = 'smem constant byte address 0x4 - core index']
  #allocation1 [shape = 'u32[144,128]{1,0:T(1,128)}', space=vmem, size = 0x12000, scoped, tag = 'internal scratch']
  %s0 = inlined_call_operand.vmem [shape: f32[16,32], index: 0, kind: input, shape index: {}]
  %s1 = inlined_call_operand.vmem [shape: f32[32,96], index: 1, kind: input, shape index: {}]
  %s2 = inlined_call_operand.vmem [shape: f32[16,96], index: 2, kind: output, shape index: {}]
  %s3 = sld [smem:[#allocation0]]
  $region18: #{multi_head_attention.3} parent=0
    _
  %s5 = ssub.s32 1, %s3
  %s6 = scalar_select 0, %s5, %s3
  // Predicated region
  $region2: #{multi_head_attention.3} parent=0 // pred_check
    _
  $region3: #{multi_head_attention.3} parent=0 // pred_check_branch
    %8 = sbr.rel (0) target = $region5
  $region4: #{multi_head_attention.3} parent=0 // pred_region
    _
  $region5: #{multi_head_attention.3} parent=0 // pred_fallthru
    _
  // Predicated region
  $region6: #{multi_head_attention.3} parent=0 // pred_check
    _
  $region7: #{multi_head_attention.3} parent=0 // pred_check_branch
    %10 = sbr.rel (0) target = $region9
  $region8: #{multi_head_attention.3} parent=0 // pred_region
    _
  $region9: #{multi_head_attention.3} parent=0 // pred_fallthru
    _
  %v11 = vld [vmem:[%s0] sm:$0xff]
  %v12 = vld [vmem:[%s0 + $0x8] sm:$0xff]
  %v13 = vld [vmem:[%s1] sm:$0xff]
  %v14 = vld [vmem:[%s1 + $0x8] sm:$0xff]
  %v15 = vld [vmem:[%s1 + $0x10] sm:$0xff]
  %v16 = vld [vmem:[%s1 + $0x18] sm:$0xff]
  %vm17 = vcmask 261120
  %v19 = vsel %vm17, %v11, 0
  %v22 = vsel %vm17, %v12, 0
  %24 = vmatprep.subr.mxu0 0.0
  %25 = vmatpush1.msra.mxu0 0.0
  %26 = vmatprep.subr.mxu0 0.0
  %27 = vmatpush1.msra.mxu0 0.0
  %28 = vmatprep.subr.mxu0 0.0
  %29 = vmatpush1.msra.mxu0 0.0
  %30 = vmatprep.subr.mxu0 0.0
  %31 = vmatpush1.msra.mxu0 0.0
  %32 = vmatprep.subr.mxu0 0.0
  %33 = vmatpush1.msra.mxu0 0.0
  %34 = vmatprep.subr.mxu0 0.0
  %35 = vmatpush1.msra.mxu0 0.0
  %36 = vmatprep.subr.mxu0 0.0
  %37 = vmatpush1.msra.mxu0 0.0
  %38 = vmatprep.subr.mxu0 0.0
  %39 = vmatpush1.msra.mxu0 0.0
  %40 = vmatprep.subr.mxu0 0.0
  %41 = vmatpush1.msra.mxu0 0.0
  %42 = vmatprep.subr.mxu0 0.0
  %43 = vmatpush1.msra.mxu0 0.0
  %44 = vmatprep.subr.mxu0 0.0
  %45 = vmatpush1.msra.mxu0 0.0
  %46 = vmatprep.subr.mxu0 0.0
  %47 = vmatpush1.msra.mxu0 0.0
  %48 = vmatprep.subr.mxu0 0.0
  %49 = vmatpush1.msra.mxu0 %v16
  %50 = vmatprep.subr.mxu0 0.0
  %51 = vmatpush1.msra.mxu0 %v15
  %52 = vmatprep.subr.mxu0 0.0
  %53 = vmatpush1.msra.mxu0 %v14
  %54 = vmatprep.subr.mxu0 0.0
  %55 = vmatpush1.msra.mxu0 %v13
  %56 = vmatprep.subr.mxu0 0.0
  %57 = vmatpush2.msra.mxu0 0.0
  %58 = vmatprep.subr.mxu0 0.0
  %59 = vmatpush2.msra.mxu0 0.0
  %60 = vmatprep.subr.mxu0 0.0
  %61 = vmatpush2.msra.mxu0 0.0
  %62 = vmatprep.subr.mxu0 0.0
  %63 = vmatpush2.msra.mxu0 0.0
  %64 = vmatprep.subr.mxu0 0.0
  %65 = vmatpush2.msra.mxu0 0.0
  %66 = vmatprep.subr.mxu0 0.0
  %67 = vmatpush2.msra.mxu0 0.0
  %68 = vmatprep.subr.mxu0 0.0
  %69 = vmatpush2.msra.mxu0 0.0
  %70 = vmatprep.subr.mxu0 0.0
  %71 = vmatpush2.msra.mxu0 0.0
  %72 = vmatprep.subr.mxu0 0.0
  %73 = vmatpush2.msra.mxu0 0.0
  %74 = vmatprep.subr.mxu0 0.0
  %75 = vmatpush2.msra.mxu0 0.0
  %76 = vmatprep.subr.mxu0 0.0
  %77 = vmatpush2.msra.mxu0 0.0
  %78 = vmatprep.subr.mxu0 0.0
  %79 = vmatpush2.msra.mxu0 0.0
  %80 = vmatprep.subr.mxu0 0.0
  %81 = vmatpush2.msra.mxu0 0.0
  %82 = vmatprep.subr.mxu0 0.0
  %83 = vmatpush2.msra.mxu0 0.0
  %84 = vmatprep.subr.mxu0 0.0
  %85 = vmatpush2.msra.mxu0 0.0
  %86 = vmatprep.subr.mxu0 0.0
  %87 = vmatpush2.msra.mxu0 0.0
  %88 = vmatprep.mubr.f32.mxu0 0.0
  %89 = vmatmul.mubr.f32.gmra.mxu0 %v19
  %v90 = vpop.f32.mrf.mxu0
  %v91 = vadd.f32 0.0, %v90
  %v92 = vpop.f32.mrf.mxu0
  %93 = vmatprep.mubr.f32.mxu0 0.0
  %94 = vmatmul.mubr.f32.gmra.mxu0 %v22
  %v95 = vpop.f32.mrf.mxu0
  %v96 = vadd.f32 0.0, %v95
  %v97 = vpop.f32.mrf.mxu0
  %98 = vdwg.mxu0
  %vm99 = vcmask 785408
  %100 = vst.msk [vmem:[%s2] sm:$0xff] %vm99, %v91
  %101 = vst.msk [vmem:[%s2 + $0x8] sm:$0xff] %vm99, %v96
  // Predicated region
  $region10: #{multi_head_attention.3} parent=0 // pred_check
    _
  $region11: #{multi_head_attention.3} parent=0 // pred_check_branch
    %103 = sbr.rel (0) target = $region13
  $region12: #{multi_head_attention.3} parent=0 // pred_region
    _
  $region13: #{multi_head_attention.3} parent=0 // pred_fallthru
    _
  // Predicated region
  $region14: #{multi_head_attention.3} parent=0 // pred_check
    _
  $region15: #{multi_head_attention.3} parent=0 // pred_check_branch
    %105 = sbr.rel (0) target = $region17
  $region16: #{multi_head_attention.3} parent=0 // pred_region
    _
  $region17: #{multi_head_attention.3} parent=0 // pred_fallthru
    _

// kernel: multi_head_attention.4
$region0: #{multi_head_attention.4}
  #allocation0 [shape = 'u32[]', space=smem, size = 0x4, offset = 0x4, fixed_abs, tag = 'smem constant byte address 0x4 - core index']
  #allocation1 [shape = 'u32[144,128]{1,0:T(1,128)}', space=vmem, size = 0x12000, scoped, tag = 'internal scratch']
  #allocation2 [shape = 'f32[4,8,1]{2,1,0:T(8,128)}', space=vmem, size = 0x4000, scoped, tag = 'scratch operand']
  #allocation3 [shape = 'f32[4,8,1]{2,1,0:T(8,128)}', space=vmem, size = 0x4000, scoped, tag = 'scratch operand']
  #allocation4 [shape = 'f32[4,8,8]{2,1,0:T(8,128)}', space=vmem, size = 0x4000, scoped, tag = 'scratch operand']
  %s0 = inlined_call_operand.vmem [shape: f32[2,4,8,8], index: 0, kind: input, shape index: {}]
  %s1 = inlined_call_operand.vmem [shape: f32[2,4,8,8], index: 1, kind: input, shape index: {}]
  %s2 = inlined_call_operand.vmem [shape: f32[2,4,8,8], index: 2, kind: input, shape index: {}]
  %s3 = inlined_call_operand.vmem [shape: f32[2,8,32], index: 3, kind: output, shape index: {}]
  %s4 = sld [smem:[#allocation0]]
  $region53: #{multi_head_attention.4} parent=0
    _
  %s6 = ssub.s32 1, %s4
  %s7 = scalar_select 0, %s6, %s4
  loop: start=0, step=1, limit=4
  $region2: #{multi_head_attention.4} parent=0 // loop_pre_header
    _
  $region3: #{multi_head_attention.4} parent=0 // loop_header
    %s9 = sphi 0, %s13
    %p10 = scmp.ge.s32.totalorder %s9, 4
    %s16 = sphi 0, %s35
    %s17 = sphi 0, %s31
    %s18 = sphi 0, %s27
    %s19 = sphi 0, %s16
    %s20 = sphi 0, %s17
    %s21 = sphi 0, %s18
    %s22 = sphi 0, %s19
    %s23 = sphi 0, %s20
    %s24 = sphi 0, %s21
    %s40 = sphi 0, %s42
    %s43 = sphi 0, %s40
    %s44 = sphi 0, %s43
    %s60 = sphi 0, %s44
    %s68 = sphi 0, %s70
    %s71 = sphi 0, %s68
    %s72 = sphi 0, %s71
    %s88 = sphi 0, %s72
    %s96 = sphi 0, %s98
    %s99 = sphi 0, %s96
    %s100 = sphi 0, %s99
    %s116 = sphi 0, %s100
    %s124 = sphi 0, %s126
    %s127 = sphi 0, %s124
    %s128 = sphi 0, %s127
    %s144 = sphi 0, %s128
  $region4: #{multi_head_attention.4} parent=0 // loop_header_branch
    %12 = sbr.rel (%p10) target = $region8
  $region5: #{multi_head_attention.4} parent=0 // loop_body
    %s14 = ssub.s32 %s9, 1
    %s15 = ssub.s32 %s9, 2
    %s25 = sadd.s32 1, %s18
    %p26 = scmp.ge.s32.totalorder %s25, 1
    %s27 = scalar_select %p26, 0, %s25
    %s28 = sadd.s32 1, %s17
    %s29 = scalar_select %p26, %s28, %s17
    %p30 = scmp.ge.s32.totalorder %s29, 1
    %s31 = scalar_select %p30, 0, %s29
    %s32 = sadd.s32 1, %s16
    %s33 = scalar_select %p30, %s32, %s16
    %p34 = scmp.ge.s32.totalorder %s33, 2
    %s35 = scalar_select %p34, 0, %s33
    %s36 = ssub.s32 %s16, %s35
    %s37 = ssub.s32 %s17, %s31
    %s38 = sor.u32 %s36, %s37
    %p39 = scmp.eq.s32.totalorder %s38, 0
    %s41 = sadd.s32 %s40, 1
    %s42 = scalar_select %p39, %s40, %s41
    %p45 = pneg %p39
    %p46 = scmp.eq.s32.totalorder %s9, 1
    %p47 = por %p45, %p46
    %p48 = scmp.ne.s32.totalorder %s40, %s43
    %p49 = scmp.eq.s32.totalorder %s9, 0
    %p50 = por %p48, %p49
    %p51 = scmp.ne.s32.totalorder %s40, %s43
    %p52 = scmp.eq.s32.totalorder %s14, 1
    %p53 = por %p51, %p52
    %p54 = scmp.ne.s32.totalorder %s43, %s44
    %p55 = scmp.eq.s32.totalorder %s14, 0
    %p56 = por %p54, %p55
    %p57 = scmp.ne.s32.totalorder %s43, %s44
    %p58 = scmp.eq.s32.totalorder %s15, 1
    %p59 = por %p57, %p58
    %p61 = scmp.ne.s32.totalorder %s44, %s60
    %p62 = scmp.eq.s32.totalorder %s15, 0
    %p63 = por %p61, %p62
    %s64 = ssub.s32 %s16, %s35
    %s65 = ssub.s32 %s18, %s27
    %s66 = sor.u32 %s64, %s65
    %p67 = scmp.eq.s32.totalorder %s66, 0
    %s69 = sadd.s32 %s68, 1
    %s70 = scalar_select %p67, %s68, %s69
    %p73 = pneg %p67
    %p74 = scmp.eq.s32.totalorder %s9, 1
    %p75 = por %p73, %p74
    %p76 = scmp.ne.s32.totalorder %s68, %s71
    %p77 = scmp.eq.s32.totalorder %s9, 0
    %p78 = por %p76, %p77
    %p79 = scmp.ne.s32.totalorder %s68, %s71
    %p80 = scmp.eq.s32.totalorder %s14, 1
    %p81 = por %p79, %p80
    %p82 = scmp.ne.s32.totalorder %s71, %s72
    %p83 = scmp.eq.s32.totalorder %s14, 0
    %p84 = por %p82, %p83
    %p85 = scmp.ne.s32.totalorder %s71, %s72
    %p86 = scmp.eq.s32.totalorder %s15, 1
    %p87 = por %p85, %p86
    %p89 = scmp.ne.s32.totalorder %s72, %s88
    %p90 = scmp.eq.s32.totalorder %s15, 0
    %p91 = por %p89, %p90
    %s92 = ssub.s32 %s16, %s35
    %s93 = ssub.s32 %s18, %s27
    %s94 = sor.u32 %s92, %s93
    %p95 = scmp.eq.s32.totalorder %s94, 0
    %s97 = sadd.s32 %s96, 1
    %s98 = scalar_select %p95, %s96, %s97
    %p101 = pneg %p95
    %p102 = scmp.eq.s32.totalorder %s9, 1
    %p103 = por %p101, %p102
    %p104 = scmp.ne.s32.totalorder %s96, %s99
    %p105 = scmp.eq.s32.totalorder %s9, 0
    %p106 = por %p104, %p105
    %p107 = scmp.ne.s32.totalorder %s96, %s99
    %p108 = scmp.eq.s32.totalorder %s14, 1
    %p109 = por %p107, %p108
    %p110 = scmp.ne.s32.totalorder %s99, %s100
    %p111 = scmp.eq.s32.totalorder %s14, 0
    %p112 = por %p110, %p111
    %p113 = scmp.ne.s32.totalorder %s99, %s100
    %p114 = scmp.eq.s32.totalorder %s15, 1
    %p115 = por %p113, %p114
    %p117 = scmp.ne.s32.totalorder %s100, %s116
    %p118 = scmp.eq.s32.totalorder %s15, 0
    %p119 = por %p117, %p118
    %s120 = ssub.s32 %s16, %s35
    %s121 = ssub.s32 %s17, %s31
    %s122 = sor.u32 %s120, %s121
    %p123 = scmp.eq.s32.totalorder %s122, 0
    %s125 = sadd.s32 %s124, 1
    %s126 = scalar_select %p123, %s124, %s125
    %p129 = pneg %p123
    %p130 = scmp.eq.s32.totalorder %s9, 1
    %p131 = por %p129, %p130
    %p132 = scmp.ne.s32.totalorder %s124, %s127
    %p133 = scmp.eq.s32.totalorder %s9, 0
    %p134 = por %p132, %p133
    %p135 = scmp.ne.s32.totalorder %s124, %s127
    %p136 = scmp.eq.s32.totalorder %s14, 1
    %p137 = por %p135, %p136
    %p138 = scmp.ne.s32.totalorder %s127, %s128
    %p139 = scmp.eq.s32.totalorder %s14, 0
    %p140 = por %p138, %p139
    %p141 = scmp.ne.s32.totalorder %s127, %s128
    %p142 = scmp.eq.s32.totalorder %s15, 1
    %p143 = por %p141, %p142
    %p145 = scmp.ne.s32.totalorder %s128, %s144
    %p146 = scmp.eq.s32.totalorder %s15, 0
    %p147 = por %p145, %p146
    %p148 = scmp.le.s32.totalorder 1, %s9
    %p149 = scmp.lt.s32.totalorder %s9, 3
    %p150 = pnand %p148, %p149
    %p151 = pneg %p150
    // Predicated region
    $region9: #{multi_head_attention.4} parent=5 // pred_check
      _
    $region10: #{multi_head_attention.4} parent=5 // pred_check_branch
      %153 = sbr.rel (%p150) target = $region12
    $region11: #{multi_head_attention.4} parent=5 // pred_region
      %s154 = ssub.s32 %s9, 1
    $region12: #{multi_head_attention.4} parent=5 // pred_fallthru
      _
    %p155 = scmp.lt.s32.totalorder %s9, 2
    // Predicated region
    $region13: #{multi_head_attention.4} parent=5 // pred_check
      %p156 = pneg %p155
    $region14: #{multi_head_attention.4} parent=5 // pred_check_branch
      %158 = sbr.rel (%p156) target = $region16
    $region15: #{multi_head_attention.4} parent=5 // pred_region
      // Predicated region
      $region17: #{multi_head_attention.4} parent=15 // pred_check
        %p159 = pneg %p50
      $region18: #{multi_head_attention.4} parent=15 // pred_check_branch
        %161 = sbr.rel (%p159) target = $region20
      $region19: #{multi_head_attention.4} parent=15 // pred_region
        %p162 = scmp.lt.s32.totalorder %s16, 1
        %s163 = scalar_select %p162, %s16, 1
        %p164 = scmp.lt.s32.totalorder %s17, 0
        %s165 = scalar_select %p164, %s17, 0
        %s166 = smul.addr %s163, 4
        %s167 = sadd.s32 %s165, %s166
        %s168 = smul.addr %s167, 8
        %s169 = scalar_lea.vmem %s0, %s168
      $region20: #{multi_head_attention.4} parent=15 // pred_fallthru
        _
      // Predicated region
      $region21: #{multi_head_attention.4} parent=15 // pred_check
        %p170 = pneg %p78
      $region22: #{multi_head_attention.4} parent=15 // pred_check_branch
        %172 = sbr.rel (%p170) target = $region24
      $region23: #{multi_head_attention.4} parent=15 // pred_region
        %p173 = scmp.lt.s32.totalorder %s16, 1
        %s174 = scalar_select %p173, %s16, 1
        %p175 = scmp.lt.s32.totalorder %s18, 0
        %s176 = scalar_select %p175, %s18, 0
        %s177 = smul.addr %s174, 4
        %s178 = sadd.s32 %s176, %s177
        %s179 = smul.addr %s178, 8
        %s180 = scalar_lea.vmem %s1, %s179
      $region24: #{multi_head_attention.4} parent=15 // pred_fallthru
        _
      // Predicated region
      $region25: #{multi_head_attention.4} parent=15 // pred_check
        %p181 = pneg %p106
      $region26: #{multi_head_attention.4} parent=15 // pred_check_branch
        %183 = sbr.rel (%p181) target = $region28
      $region27: #{multi_head_attention.4} parent=15 // pred_region
        %p184 = scmp.lt.s32.totalorder %s16, 1
        %s185 = scalar_select %p184, %s16, 1
        %p186 = scmp.lt.s32.totalorder %s18, 0
        %s187 = scalar_select %p186, %s18, 0
        %s188 = smul.addr %s185, 4
        %s189 = sadd.s32 %s187, %s188
        %s190 = smul.addr %s189, 8
        %s191 = scalar_lea.vmem %s2, %s190
      $region28: #{multi_head_attention.4} parent=15 // pred_fallthru
        _
    $region16: #{multi_head_attention.4} parent=5 // pred_fallthru
      _
    %p192 = scmp.le.s32.totalorder 1, %s9
    %p193 = scmp.lt.s32.totalorder %s9, 3
    %p194 = pnand %p192, %p193
    %p195 = pneg %p194
    // Predicated region
    $region29: #{multi_head_attention.4} parent=5 // pred_check
      _
    $region30: #{multi_head_attention.4} parent=5 // pred_check_branch
      %197 = sbr.rel (%p194) target = $region32
    $region31: #{multi_head_attention.4} parent=5 // pred_region
      %s198 = ssub.s32 %s9, 1
      %p199 = scmp.lt.s32.totalorder %s19, 1
      %s200 = scalar_select %p199, %s19, 1
      %p201 = scmp.lt.s32.totalorder %s20, 0
      %s202 = scalar_select %p201, %s20, 0
      %s203 = smul.addr %s200, 4
      %s204 = sadd.s32 %s202, %s203
      %s205 = smul.addr %s204, 8
      %s206 = scalar_lea.vmem %s0, %s205
      %p207 = pneg %p56
      %p208 = pneg %p53
      %p209 = scmp.lt.s32.totalorder %s19, 1
      %s210 = scalar_select %p209, %s19, 1
      %p211 = scmp.lt.s32.totalorder %s21, 0
      %s212 = scalar_select %p211, %s21, 0
      %s213 = smul.addr %s210, 4
      %s214 = sadd.s32 %s212, %s213
      %s215 = smul.addr %s214, 8
      %s216 = scalar_lea.vmem %s1, %s215
      %p217 = pneg %p84
      %p218 = pneg %p81
      %p219 = scmp.lt.s32.totalorder %s19, 1
      %s220 = scalar_select %p219, %s19, 1
      %p221 = scmp.lt.s32.totalorder %s21, 0
      %s222 = scalar_select %p221, %s21, 0
      %s223 = smul.addr %s220, 4
      %s224 = sadd.s32 %s222, %s223
      %s225 = smul.addr %s224, 8
      %s226 = scalar_lea.vmem %s2, %s225
      %p227 = pneg %p112
      %p228 = pneg %p109
      %p229 = pneg %p140
      %p230 = pneg %p137
      %p231 = scmp.lt.s32.totalorder %s19, 1
      %s232 = scalar_select %p231, %s19, 1
      %p233 = scmp.lt.s32.totalorder %s20, 0
      %s234 = scalar_select %p233, %s20, 0
      %s235 = sadd.s32 %s234, %s232
      %s236 = smul.addr %s235, 8
      %s237 = scalar_lea.vmem %s3, %s236
      %p238 = scmp.lt.s32.totalorder %s19, 1
      %s239 = scalar_select %p238, %s19, 1
      %p240 = scmp.lt.s32.totalorder %s20, 0
      %s241 = scalar_select %p240, %s20, 0
      %s242 = smul.addr %s239, 4
      %s243 = sadd.s32 %s241, %s242
      %s244 = smul.addr %s243, 8
      %s245 = scalar_lea.vmem %s0, %s244
      %p246 = scmp.lt.s32.totalorder %s19, 1
      %s247 = scalar_select %p246, %s19, 1
      %p248 = scmp.lt.s32.totalorder %s21, 0
      %s249 = scalar_select %p248, %s21, 0
      %s250 = smul.addr %s247, 4
      %s251 = sadd.s32 %s249, %s250
      %s252 = smul.addr %s251, 8
      %s253 = scalar_lea.vmem %s1, %s252
      %p254 = scmp.lt.s32.totalorder %s19, 1
      %s255 = scalar_select %p254, %s19, 1
      %p256 = scmp.lt.s32.totalorder %s21, 0
      %s257 = scalar_select %p256, %s21, 0
      %s258 = smul.addr %s255, 4
      %s259 = sadd.s32 %s257, %s258
      %s260 = smul.addr %s259, 8
      %s261 = scalar_lea.vmem %s2, %s260
      %p262 = scmp.lt.s32.totalorder %s19, 1
      %s263 = scalar_select %p262, %s19, 1
      %p264 = scmp.lt.s32.totalorder %s20, 0
      %s265 = scalar_select %p264, %s20, 0
      %s266 = sadd.s32 %s265, %s263
      %s267 = smul.addr %s266, 8
      %s268 = scalar_lea.vmem %s3, %s267
      %p269 = scmp.eq.s32.totalorder %s21, 0
      // Predicated region
      $region33: #{multi_head_attention.4} parent=31 // pred_check
        %p270 = pneg %p269
      $region34: #{multi_head_attention.4} parent=31 // pred_check_branch
        %272 = sbr.rel (%p270) target = $region36
      $region35: #{multi_head_attention.4} parent=31 // pred_region
        %vm273 = vcmask 7168
        %274 = vst.msk [vmem:[#allocation2] sm:$0xff] %vm273, -inf
        %275 = vst.msk [vmem:[#allocation2 + $0x8] sm:$0xff] %vm273, -inf
        %276 = vst.msk [vmem:[#allocation2 + $0x10] sm:$0xff] %vm273, -inf
        %277 = vst.msk [vmem:[#allocation2 + $0x18] sm:$0xff] %vm273, -inf
        %278 = vst.msk [vmem:[#allocation3] sm:$0xff] %vm273, 0.0
        %279 = vst.msk [vmem:[#allocation3 + $0x8] sm:$0xff] %vm273, 0.0
        %280 = vst.msk [vmem:[#allocation3 + $0x10] sm:$0xff] %vm273, 0.0
        %281 = vst.msk [vmem:[#allocation3 + $0x18] sm:$0xff] %vm273, 0.0
        %vm282 = vcmask 64512
        %283 = vst.msk [vmem:[#allocation4] sm:$0xff] %vm282, 0.0
        %284 = vst.msk [vmem:[#allocation4 + $0x8] sm:$0xff] %vm282, 0.0
        %285 = vst.msk [vmem:[#allocation4 + $0x10] sm:$0xff] %vm282, 0.0
        %286 = vst.msk [vmem:[#allocation4 + $0x18] sm:$0xff] %vm282, 0.0
      $region36: #{multi_head_attention.4} parent=31 // pred_fallthru
        _
      %v287 = vld [vmem:[%s245] sm:$0xff]
      %v288 = vld [vmem:[%s245 + $0x8] sm:$0xff]
      %v289 = vld [vmem:[%s245 + $0x10] sm:$0xff]
      %v290 = vld [vmem:[%s245 + $0x18] sm:$0xff]
      %v291 = vld [vmem:[%s253] sm:$0xff]
      %v292 = vld [vmem:[%s253 + $0x8] sm:$0xff]
      %v293 = vld [vmem:[%s253 + $0x10] sm:$0xff]
      %v294 = vld [vmem:[%s253 + $0x18] sm:$0xff]
      %v295 = vld [vmem:[%s261] sm:$0xff]
      %v296 = vld [vmem:[%s261 + $0x8] sm:$0xff]
      %v297 = vld [vmem:[%s261 + $0x10] sm:$0xff]
      %v298 = vld [vmem:[%s261 + $0x18] sm:$0xff]
      %vm299 = vcmask 64512
      %v301 = vsel %vm299, %v287, 0
      %v304 = vsel %vm299, %v291, 0
      %306 = vmatprep.subr.mxu0 0.0
      %307 = vmatpush1.xpose.msra.mxu0 0.0
      %308 = vmatprep.subr.mxu0 0.0
      %309 = vmatpush1.xpose.msra.mxu0 0.0
      %310 = vmatprep.subr.mxu0 0.0
      %311 = vmatpush1.xpose.msra.mxu0 0.0
      %312 = vmatprep.subr.mxu0 0.0
      %313 = vmatpush1.xpose.msra.mxu0 0.0
      %314 = vmatprep.subr.mxu0 0.0
      %315 = vmatpush1.xpose.msra.mxu0 0.0
      %316 = vmatprep.subr.mxu0 0.0
      %317 = vmatpush1.xpose.msra.mxu0 0.0
      %318 = vmatprep.subr.mxu0 0.0
      %319 = vmatpush1.xpose.msra.mxu0 0.0
      %320 = vmatprep.subr.mxu0 0.0
      %321 = vmatpush1.xpose.msra.mxu0 0.0
      %322 = vmatprep.subr.mxu0 0.0
      %323 = vmatpush1.xpose.msra.mxu0 0.0
      %324 = vmatprep.subr.mxu0 0.0
      %325 = vmatpush1.xpose.msra.mxu0 0.0
      %326 = vmatprep.subr.mxu0 0.0
      %327 = vmatpush1.xpose.msra.mxu0 0.0
      %328 = vmatprep.subr.mxu0 0.0
      %329 = vmatpush1.xpose.msra.mxu0 0.0
      %330 = vmatprep.subr.mxu0 0.0
      %331 = vmatpush1.xpose.msra.mxu0 0.0
      %332 = vmatprep.subr.mxu0 0.0
      %333 = vmatpush1.xpose.msra.mxu0 0.0
      %334 = vmatprep.subr.mxu0 0.0
      %335 = vmatpush1.xpose.msra.mxu0 0.0
      %336 = vmatprep.subr.mxu0 0.0
      %337 = vmatpush1.xpose.msra.mxu0 %v304
      %338 = vmatprep.subr.mxu0 0.0
      %339 = vmatpush2.xpose.msra.mxu0 0.0
      %340 = vmatprep.subr.mxu0 0.0
      %341 = vmatpush2.xpose.msra.mxu0 0.0
      %342 = vmatprep.subr.mxu0 0.0
      %343 = vmatpush2.xpose.msra.mxu0 0.0
      %344 = vmatprep.subr.mxu0 0.0
      %345 = vmatpush2.xpose.msra.mxu0 0.0
      %346 = vmatprep.subr.mxu0 0.0
      %347 = vmatpush2.xpose.msra.mxu0 0.0
      %348 = vmatprep.subr.mxu0 0.0
      %349 = vmatpush2.xpose.msra.mxu0 0.0
      %350 = vmatprep.subr.mxu0 0.0
      %351 = vmatpush2.xpose.msra.mxu0 0.0
      %352 = vmatprep.subr.mxu0 0.0
      %353 = vmatpush2.xpose.msra.mxu0 0.0
      %354 = vmatprep.subr.mxu0 0.0
      %355 = vmatpush2.xpose.msra.mxu0 0.0
      %356 = vmatprep.subr.mxu0 0.0
      %357 = vmatpush2.xpose.msra.mxu0 0.0
      %358 = vmatprep.subr.mxu0 0.0
      %359 = vmatpush2.xpose.msra.mxu0 0.0
      %360 = vmatprep.subr.mxu0 0.0
      %361 = vmatpush2.xpose.msra.mxu0 0.0
      %362 = vmatprep.subr.mxu0 0.0
      %363 = vmatpush2.xpose.msra.mxu0 0.0
      %364 = vmatprep.subr.mxu0 0.0
      %365 = vmatpush2.xpose.msra.mxu0 0.0
      %366 = vmatprep.subr.mxu0 0.0
      %367 = vmatpush2.xpose.msra.mxu0 0.0
      %368 = vmatprep.subr.mxu0 0.0
      %369 = vmatpush2.xpose.msra.mxu0 0.0
      %370 = vmatprep.mubr.f32.mxu0 0.0
      %371 = vmatmul.mubr.f32.gmra.mxu0 %v301
      %v372 = vpop.f32.mrf.mxu0
      %v373 = vadd.f32 0.0, %v372
      %v374 = vpop.f32.mrf.mxu0
      %375 = vdwg.mxu0
      %v377 = vsel %vm299, %v288, 0
      %v380 = vsel %vm299, %v292, 0
      %382 = vmatprep.subr.mxu0 0.0
      %383 = vmatpush1.xpose.msra.mxu0 0.0
      %384 = vmatprep.subr.mxu0 0.0
      %385 = vmatpush1.xpose.msra.mxu0 0.0
      %386 = vmatprep.subr.mxu0 0.0
      %387 = vmatpush1.xpose.msra.mxu0 0.0
      %388 = vmatprep.subr.mxu0 0.0
      %389 = vmatpush1.xpose.msra.mxu0 0.0
      %390 = vmatprep.subr.mxu0 0.0
      %391 = vmatpush1.xpose.msra.mxu0 0.0
      %392 = vmatprep.subr.mxu0 0.0
      %393 = vmatpush1.xpose.msra.mxu0 0.0
      %394 = vmatprep.subr.mxu0 0.0
      %395 = vmatpush1.xpose.msra.mxu0 0.0
      %396 = vmatprep.subr.mxu0 0.0
      %397 = vmatpush1.xpose.msra.mxu0 0.0
      %398 = vmatprep.subr.mxu0 0.0
      %399 = vmatpush1.xpose.msra.mxu0 0.0
      %400 = vmatprep.subr.mxu0 0.0
      %401 = vmatpush1.xpose.msra.mxu0 0.0
      %402 = vmatprep.subr.mxu0 0.0
      %403 = vmatpush1.xpose.msra.mxu0 0.0
      %404 = vmatprep.subr.mxu0 0.0
      %405 = vmatpush1.xpose.msra.mxu0 0.0
      %406 = vmatprep.subr.mxu0 0.0
      %407 = vmatpush1.xpose.msra.mxu0 0.0
      %408 = vmatprep.subr.mxu0 0.0
      %409 = vmatpush1.xpose.msra.mxu0 0.0
      %410 = vmatprep.subr.mxu0 0.0
      %411 = vmatpush1.xpose.msra.mxu0 0.0
      %412 = vmatprep.subr.mxu0 0.0
      %413 = vmatpush1.xpose.msra.mxu0 %v380
      %414 = vmatprep.subr.mxu0 0.0
      %415 = vmatpush2.xpose.msra.mxu0 0.0
      %416 = vmatprep.subr.mxu0 0.0
      %417 = vmatpush2.xpose.msra.mxu0 0.0
      %418 = vmatprep.subr.mxu0 0.0
      %419 = vmatpush2.xpose.msra.mxu0 0.0
      %420 = vmatprep.subr.mxu0 0.0
      %421 = vmatpush2.xpose.msra.mxu0 0.0
      %422 = vmatprep.subr.mxu0 0.0
      %423 = vmatpush2.xpose.msra.mxu0 0.0
      %424 = vmatprep.subr.mxu0 0.0
      %425 = vmatpush2.xpose.msra.mxu0 0.0
      %426 = vmatprep.subr.mxu0 0.0
      %427 = vmatpush2.xpose.msra.mxu0 0.0
      %428 = vmatprep.subr.mxu0 0.0
      %429 = vmatpush2.xpose.msra.mxu0 0.0
      %430 = vmatprep.subr.mxu0 0.0
      %431 = vmatpush2.xpose.msra.mxu0 0.0
      %432 = vmatprep.subr.mxu0 0.0
      %433 = vmatpush2.xpose.msra.mxu0 0.0
      %434 = vmatprep.subr.mxu0 0.0
      %435 = vmatpush2.xpose.msra.mxu0 0.0
      %436 = vmatprep.subr.mxu0 0.0
      %437 = vmatpush2.xpose.msra.mxu0 0.0
      %438 = vmatprep.subr.mxu0 0.0
      %439 = vmatpush2.xpose.msra.mxu0 0.0
      %440 = vmatprep.subr.mxu0 0.0
      %441 = vmatpush2.xpose.msra.mxu0 0.0
      %442 = vmatprep.subr.mxu0 0.0
      %443 = vmatpush2.xpose.msra.mxu0 0.0
      %444 = vmatprep.subr.mxu0 0.0
      %445 = vmatpush2.xpose.msra.mxu0 0.0
      %446 = vmatprep.mubr.f32.mxu0 0.0
      %447 = vmatmul.mubr.f32.gmra.mxu0 %v377
      %v448 = vpop.f32.mrf.mxu0
      %v449 = vadd.f32 0.0, %v448
      %v450 = vpop.f32.mrf.mxu0
      %451 = vdwg.mxu0
      %v453 = vsel %vm299, %v289, 0
      %v456 = vsel %vm299, %v293, 0
      %458 = vmatprep.subr.mxu0 0.0
      %459 = vmatpush1.xpose.msra.mxu0 0.0
      %460 = vmatprep.subr.mxu0 0.0
      %461 = vmatpush1.xpose.msra.mxu0 0.0
      %462 = vmatprep.subr.mxu0 0.0
      %463 = vmatpush1.xpose.msra.mxu0 0.0
      %464 = vmatprep.subr.mxu0 0.0
      %465 = vmatpush1.xpose.msra.mxu0 0.0
      %466 = vmatprep.subr.mxu0 0.0
      %467 = vmatpush1.xpose.msra.mxu0 0.0
      %468 = vmatprep.subr.mxu0 0.0
      %469 = vmatpush1.xpose.msra.mxu0 0.0
      %470 = vmatprep.subr.mxu0 0.0
      %471 = vmatpush1.xpose.msra.mxu0 0.0
      %472 = vmatprep.subr.mxu0 0.0
      %473 = vmatpush1.xpose.msra.mxu0 0.0
      %474 = vmatprep.subr.mxu0 0.0
      %475 = vmatpush1.xpose.msra.mxu0 0.0
      %476 = vmatprep.subr.mxu0 0.0
      %477 = vmatpush1.xpose.msra.mxu0 0.0
      %478 = vmatprep.subr.mxu0 0.0
      %479 = vmatpush1.xpose.msra.mxu0 0.0
      %480 = vmatprep.subr.mxu0 0.0
      %481 = vmatpush1.xpose.msra.mxu0 0.0
      %482 = vmatprep.subr.mxu0 0.0
      %483 = vmatpush1.xpose.msra.mxu0 0.0
      %484 = vmatprep.subr.mxu0 0.0
      %485 = vmatpush1.xpose.msra.mxu0 0.0
      %486 = vmatprep.subr.mxu0 0.0
      %487 = vmatpush1.xpose.msra.mxu0 0.0
      %488 = vmatprep.subr.mxu0 0.0
      %489 = vmatpush1.xpose.msra.mxu0 %v456
      %490 = vmatprep.subr.mxu0 0.0
      %491 = vmatpush2.xpose.msra.mxu0 0.0
      %492 = vmatprep.subr.mxu0 0.0
      %493 = vmatpush2.xpose.msra.mxu0 0.0
      %494 = vmatprep.subr.mxu0 0.0
      %495 = vmatpush2.xpose.msra.mxu0 0.0
      %496 = vmatprep.subr.mxu0 0.0
      %497 = vmatpush2.xpose.msra.mxu0 0.0
      %498 = vmatprep.subr.mxu0 0.0
      %499 = vmatpush2.xpose.msra.mxu0 0.0
      %500 = vmatprep.subr.mxu0 0.0
      %501 = vmatpush2.xpose.msra.mxu0 0.0
      %502 = vmatprep.subr.mxu0 0.0
      %503 = vmatpush2.xpose.msra.mxu0 0.0
      %504 = vmatprep.subr.mxu0 0.0
      %505 = vmatpush2.xpose.msra.mxu0 0.0
      %506 = vmatprep.subr.mxu0 0.0
      %507 = vmatpush2.xpose.msra.mxu0 0.0
      %508 = vmatprep.subr.mxu0 0.0
      %509 = vmatpush2.xpose.msra.mxu0 0.0
      %510 = vmatprep.subr.mxu0 0.0
      %511 = vmatpush2.xpose.msra.mxu0 0.0
      %512 = vmatprep.subr.mxu0 0.0
      %513 = vmatpush2.xpose.msra.mxu0 0.0
      %514 = vmatprep.subr.mxu0 0.0
      %515 = vmatpush2.xpose.msra.mxu0 0.0
      %516 = vmatprep.subr.mxu0 0.0
      %517 = vmatpush2.xpose.msra.mxu0 0.0
      %518 = vmatprep.subr.mxu0 0.0
      %519 = vmatpush2.xpose.msra.mxu0 0.0
      %520 = vmatprep.subr.mxu0 0.0
      %521 = vmatpush2.xpose.msra.mxu0 0.0
      %522 = vmatprep.mubr.f32.mxu0 0.0
      %523 = vmatmul.mubr.f32.gmra.mxu0 %v453
      %v524 = vpop.f32.mrf.mxu0
      %v525 = vadd.f32 0.0, %v524
      %v526 = vpop.f32.mrf.mxu0
      %527 = vdwg.mxu0
      %v529 = vsel %vm299, %v290, 0
      %v532 = vsel %vm299, %v294, 0
      %534 = vmatprep.subr.mxu0 0.0
      %535 = vmatpush1.xpose.msra.mxu0 0.0
      %536 = vmatprep.subr.mxu0 0.0
      %537 = vmatpush1.xpose.msra.mxu0 0.0
      %538 = vmatprep.subr.mxu0 0.0
      %539 = vmatpush1.xpose.msra.mxu0 0.0
      %540 = vmatprep.subr.mxu0 0.0
      %541 = vmatpush1.xpose.msra.mxu0 0.0
      %542 = vmatprep.subr.mxu0 0.0
      %543 = vmatpush1.xpose.msra.mxu0 0.0
      %544 = vmatprep.subr.mxu0 0.0
      %545 = vmatpush1.xpose.msra.mxu0 0.0
      %546 = vmatprep.subr.mxu0 0.0
      %547 = vmatpush1.xpose.msra.mxu0 0.0
      %548 = vmatprep.subr.mxu0 0.0
      %549 = vmatpush1.xpose.msra.mxu0 0.0
      %550 = vmatprep.subr.mxu0 0.0
      %551 = vmatpush1.xpose.msra.mxu0 0.0
      %552 = vmatprep.subr.mxu0 0.0
      %553 = vmatpush1.xpose.msra.mxu0 0.0
      %554 = vmatprep.subr.mxu0 0.0
      %555 = vmatpush1.xpose.msra.mxu0 0.0
      %556 = vmatprep.subr.mxu0 0.0
      %557 = vmatpush1.xpose.msra.mxu0 0.0
      %558 = vmatprep.subr.mxu0 0.0
      %559 = vmatpush1.xpose.msra.mxu0 0.0
      %560 = vmatprep.subr.mxu0 0.0
      %561 = vmatpush1.xpose.msra.mxu0 0.0
      %562 = vmatprep.subr.mxu0 0.0
      %563 = vmatpush1.xpose.msra.mxu0 0.0
      %564 = vmatprep.subr.mxu0 0.0
      %565 = vmatpush1.xpose.msra.mxu0 %v532
      %566 = vmatprep.subr.mxu0 0.0
      %567 = vmatpush2.xpose.msra.mxu0 0.0
      %568 = vmatprep.subr.mxu0 0.0
      %569 = vmatpush2.xpose.msra.mxu0 0.0
      %570 = vmatprep.subr.mxu0 0.0
      %571 = vmatpush2.xpose.msra.mxu0 0.0
      %572 = vmatprep.subr.mxu0 0.0
      %573 = vmatpush2.xpose.msra.mxu0 0.0
      %574 = vmatprep.subr.mxu0 0.0
      %575 = vmatpush2.xpose.msra.mxu0 0.0
      %576 = vmatprep.subr.mxu0 0.0
      %577 = vmatpush2.xpose.msra.mxu0 0.0
      %578 = vmatprep.subr.mxu0 0.0
      %579 = vmatpush2.xpose.msra.mxu0 0.0
      %580 = vmatprep.subr.mxu0 0.0
      %581 = vmatpush2.xpose.msra.mxu0 0.0
      %582 = vmatprep.subr.mxu0 0.0
      %583 = vmatpush2.xpose.msra.mxu0 0.0
      %584 = vmatprep.subr.mxu0 0.0
      %585 = vmatpush2.xpose.msra.mxu0 0.0
      %586 = vmatprep.subr.mxu0 0.0
      %587 = vmatpush2.xpose.msra.mxu0 0.0
      %588 = vmatprep.subr.mxu0 0.0
      %589 = vmatpush2.xpose.msra.mxu0 0.0
      %590 = vmatprep.subr.mxu0 0.0
      %591 = vmatpush2.xpose.msra.mxu0 0.0
      %592 = vmatprep.subr.mxu0 0.0
      %593 = vmatpush2.xpose.msra.mxu0 0.0
      %594 = vmatprep.subr.mxu0 0.0
      %595 = vmatpush2.xpose.msra.mxu0 0.0
      %596 = vmatprep.subr.mxu0 0.0
      %597 = vmatpush2.xpose.msra.mxu0 0.0
      %598 = vmatprep.mubr.f32.mxu0 0.0
      %599 = vmatmul.mubr.f32.gmra.mxu0 %v529
      %v600 = vpop.f32.mrf.mxu0
      %v601 = vadd.f32 0.0, %v600
      %v602 = vpop.f32.mrf.mxu0
      %603 = vdwg.mxu0
      %v604 = vld [vmem:[#allocation2] sm:$0xff]
      %v605 = vld [vmem:[#allocation2 + $0x8] sm:$0xff]
      %v606 = vld [vmem:[#allocation2 + $0x10] sm:$0xff]
      %v607 = vld [vmem:[#allocation2 + $0x18] sm:$0xff]
      %v608 = vsel %vm299, %v373, -inf
      %609 = vmax.xlane.f32.xlu0 %v608
      %v610 = vpop.xlane.xlu0 %609
      %v611 = vsel %vm299, %v449, -inf
      %612 = vmax.xlane.f32.xlu0 %v611
      %v613 = vpop.xlane.xlu0 %612
      %v614 = vsel %vm299, %v525, -inf
      %615 = vmax.xlane.f32.xlu0 %v614
      %v616 = vpop.xlane.xlu0 %615
      %v617 = vsel %vm299, %v601, -inf
      %618 = vmax.xlane.f32.xlu0 %v617
      %v619 = vpop.xlane.xlu0 %618
      %v620 = vmax.f32 %v604, %v610
      %v621 = vmax.f32 %v605, %v613
      %v622 = vmax.f32 %v606, %v616
      %v623 = vmax.f32 %v607, %v619
      %v624 = vsub.f32 %v604, %v620
      %v625 = vsub.f32 %v605, %v621
      %v626 = vsub.f32 %v606, %v622
      %v627 = vsub.f32 %v607, %v623
      %v628 = vmul.f32 %v624, 1.442695
      %v629 = vpow.pop %v628
      %v630 = vmul.f32 %v625, 1.442695
      %v631 = vpow.pop %v630
      %v632 = vmul.f32 %v626, 1.442695
      %v633 = vpow.pop %v632
      %v634 = vmul.f32 %v627, 1.442695
      %v635 = vpow.pop %v634
      %637 = vset.pattern.permute.xlu0 0
      %638 = vperm.xlu0 %637, %v620
      %v639 = vpop.permute.xlu0 %638
      %642 = vset.pattern.permute.xlu0 0
      %643 = vperm.xlu0 %642, %v621
      %v644 = vpop.permute.xlu0 %643
      %647 = vset.pattern.permute.xlu0 0
      %648 = vperm.xlu0 %647, %v622
      %v649 = vpop.permute.xlu0 %648
      %652 = vset.pattern.permute.xlu0 0
      %653 = vperm.xlu0 %652, %v623
      %v654 = vpop.permute.xlu0 %653
      %v656 = vsub.f32 %v373, %v639
      %v657 = vsub.f32 %v449, %v644
      %v658 = vsub.f32 %v525, %v649
      %v659 = vsub.f32 %v601, %v654
      %v660 = vmul.f32 %v656, 1.442695
      %v661 = vpow.pop %v660
      %v662 = vmul.f32 %v657, 1.442695
      %v663 = vpow.pop %v662
      %v664 = vmul.f32 %v658, 1.442695
      %v665 = vpow.pop %v664
      %v666 = vmul.f32 %v659, 1.442695
      %v667 = vpow.pop %v666
      %v668 = vld [vmem:[#allocation3] sm:$0xff]
      %v669 = vld [vmem:[#allocation3 + $0x8] sm:$0xff]
      %v670 = vld [vmem:[#allocation3 + $0x10] sm:$0xff]
      %v671 = vld [vmem:[#allocation3 + $0x18] sm:$0xff]
      %v672 = vmul.f32 %v629, %v668
      %v673 = vmul.f32 %v631, %v669
      %v674 = vmul.f32 %v633, %v670
      %v675 = vmul.f32 %v635, %v671
      %v676 = vsel %vm299, %v661, 0.0
      %677 = vadd.xlane.f32.xlu0 %v676
      %v678 = vpop.xlane.xlu0 %677
      %v679 = vsel %vm299, %v663, 0.0
      %680 = vadd.xlane.f32.xlu0 %v679
      %v681 = vpop.xlane.xlu0 %680
      %v682 = vsel %vm299, %v665, 0.0
      %683 = vadd.xlane.f32.xlu0 %v682
      %v684 = vpop.xlane.xlu0 %683
      %v685 = vsel %vm299, %v667, 0.0
      %686 = vadd.xlane.f32.xlu0 %v685
      %v687 = vpop.xlane.xlu0 %686
      %v688 = vadd.f32 %v672, %v678
      %v689 = vadd.f32 %v673, %v681
      %v690 = vadd.f32 %v674, %v684
      %v691 = vadd.f32 %v675, %v687
      %vm692 = vcmask 7168
      %693 = vst.msk [vmem:[#allocation3] sm:$0xff] %vm692, %v688
      %694 = vst.msk [vmem:[#allocation3 + $0x8] sm:$0xff] %vm692, %v689
      %695 = vst.msk [vmem:[#allocation3 + $0x10] sm:$0xff] %vm692, %v690
      %696 = vst.msk [vmem:[#allocation3 + $0x18] sm:$0xff] %vm692, %v691
      %v697 = vld [vmem:[#allocation4] sm:$0xff]
      %v698 = vld [vmem:[#allocation4 + $0x8] sm:$0xff]
      %v699 = vld [vmem:[#allocation4 + $0x10] sm:$0xff]
      %v700 = vld [vmem:[#allocation4 + $0x18] sm:$0xff]
      %702 = vset.pattern.permute.xlu0 0
      %703 = vperm.xlu0 %702, %v629
      %v704 = vpop.permute.xlu0 %703
      %707 = vset.pattern.permute.xlu0 0
      %708 = vperm.xlu0 %707, %v631
      %v709 = vpop.permute.xlu0 %708
      %712 = vset.pattern.permute.xlu0 0
      %713 = vperm.xlu0 %712, %v633
      %v714 = vpop.permute.xlu0 %713
      %717 = vset.pattern.permute.xlu0 0
      %718 = vperm.xlu0 %717, %v635
      %v719 = vpop.permute.xlu0 %718
      %v721 = vmul.f32 %v704, %v697
      %v722 = vmul.f32 %v709, %v698
      %v723 = vmul.f32 %v714, %v699
      %v724 = vmul.f32 %v719, %v700
      %v726 = vsel %vm299, %v661, 0
      %728 = vmatprep.subr.mxu0 0.0
      %729 = vmatpush1.msra.mxu0 0.0
      %730 = vmatprep.subr.mxu0 0.0
      %731 = vmatpush1.msra.mxu0 0.0
      %732 = vmatprep.subr.mxu0 0.0
      %733 = vmatpush1.msra.mxu0 0.0
      %734 = vmatprep.subr.mxu0 0.0
      %735 = vmatpush1.msra.mxu0 0.0
      %736 = vmatprep.subr.mxu0 0.0
      %737 = vmatpush1.msra.mxu0 0.0
      %738 = vmatprep.subr.mxu0 0.0
      %739 = vmatpush1.msra.mxu0 0.0
      %740 = vmatprep.subr.mxu0 0.0
      %741 = vmatpush1.msra.mxu0 0.0
      %742 = vmatprep.subr.mxu0 0.0
      %743 = vmatpush1.msra.mxu0 0.0
      %744 = vmatprep.subr.mxu0 0.0
      %745 = vmatpush1.msra.mxu0 0.0
      %746 = vmatprep.subr.mxu0 0.0
      %747 = vmatpush1.msra.mxu0 0.0
      %748 = vmatprep.subr.mxu0 0.0
      %749 = vmatpush1.msra.mxu0 0.0
      %750 = vmatprep.subr.mxu0 0.0
      %751 = vmatpush1.msra.mxu0 0.0
      %752 = vmatprep.subr.mxu0 0.0
      %753 = vmatpush1.msra.mxu0 0.0
      %754 = vmatprep.subr.mxu0 0.0
      %755 = vmatpush1.msra.mxu0 0.0
      %756 = vmatprep.subr.mxu0 0.0
      %757 = vmatpush1.msra.mxu0 0.0
      %758 = vmatprep.subr.mxu0 0.0
      %759 = vmatpush1.msra.mxu0 %v295
      %760 = vmatprep.subr.mxu0 0.0
      %761 = vmatpush2.msra.mxu0 0.0
      %762 = vmatprep.subr.mxu0 0.0
      %763 = vmatpush2.msra.mxu0 0.0
      %764 = vmatprep.subr.mxu0 0.0
      %765 = vmatpush2.msra.mxu0 0.0
      %766 = vmatprep.subr.mxu0 0.0
      %767 = vmatpush2.msra.mxu0 0.0
      %768 = vmatprep.subr.mxu0 0.0
      %769 = vmatpush2.msra.mxu0 0.0
      %770 = vmatprep.subr.mxu0 0.0
      %771 = vmatpush2.msra.mxu0 0.0
      %772 = vmatprep.subr.mxu0 0.0
      %773 = vmatpush2.msra.mxu0 0.0
      %774 = vmatprep.subr.mxu0 0.0
      %775 = vmatpush2.msra.mxu0 0.0
      %776 = vmatprep.subr.mxu0 0.0
      %777 = vmatpush2.msra.mxu0 0.0
      %778 = vmatprep.subr.mxu0 0.0
      %779 = vmatpush2.msra.mxu0 0.0
      %780 = vmatprep.subr.mxu0 0.0
      %781 = vmatpush2.msra.mxu0 0.0
      %782 = vmatprep.subr.mxu0 0.0
      %783 = vmatpush2.msra.mxu0 0.0
      %784 = vmatprep.subr.mxu0 0.0
      %785 = vmatpush2.msra.mxu0 0.0
      %786 = vmatprep.subr.mxu0 0.0
      %787 = vmatpush2.msra.mxu0 0.0
      %788 = vmatprep.subr.mxu0 0.0
      %789 = vmatpush2.msra.mxu0 0.0
      %790 = vmatprep.subr.mxu0 0.0
      %791 = vmatpush2.msra.mxu0 0.0
      %792 = vmatprep.mubr.f32.mxu0 0.0
      %793 = vmatmul.mubr.f32.gmra.mxu0 %v726
      %v794 = vpop.f32.mrf.mxu0
      %v795 = vadd.f32 0.0, %v794
      %v796 = vpop.f32.mrf.mxu0
      %797 = vdwg.mxu0
      %v799 = vsel %vm299, %v663, 0
      %801 = vmatprep.subr.mxu0 0.0
      %802 = vmatpush1.msra.mxu0 0.0
      %803 = vmatprep.subr.mxu0 0.0
      %804 = vmatpush1.msra.mxu0 0.0
      %805 = vmatprep.subr.mxu0 0.0
      %806 = vmatpush1.msra.mxu0 0.0
      %807 = vmatprep.subr.mxu0 0.0
      %808 = vmatpush1.msra.mxu0 0.0
      %809 = vmatprep.subr.mxu0 0.0
      %810 = vmatpush1.msra.mxu0 0.0
      %811 = vmatprep.subr.mxu0 0.0
      %812 = vmatpush1.msra.mxu0 0.0
      %813 = vmatprep.subr.mxu0 0.0
      %814 = vmatpush1.msra.mxu0 0.0
      %815 = vmatprep.subr.mxu0 0.0
      %816 = vmatpush1.msra.mxu0 0.0
      %817 = vmatprep.subr.mxu0 0.0
      %818 = vmatpush1.msra.mxu0 0.0
      %819 = vmatprep.subr.mxu0 0.0
      %820 = vmatpush1.msra.mxu0 0.0
      %821 = vmatprep.subr.mxu0 0.0
      %822 = vmatpush1.msra.mxu0 0.0
      %823 = vmatprep.subr.mxu0 0.0
      %824 = vmatpush1.msra.mxu0 0.0
      %825 = vmatprep.subr.mxu0 0.0
      %826 = vmatpush1.msra.mxu0 0.0
      %827 = vmatprep.subr.mxu0 0.0
      %828 = vmatpush1.msra.mxu0 0.0
      %829 = vmatprep.subr.mxu0 0.0
      %830 = vmatpush1.msra.mxu0 0.0
      %831 = vmatprep.subr.mxu0 0.0
      %832 = vmatpush1.msra.mxu0 %v296
      %833 = vmatprep.subr.mxu0 0.0
      %834 = vmatpush2.msra.mxu0 0.0
      %835 = vmatprep.subr.mxu0 0.0
      %836 = vmatpush2.msra.mxu0 0.0
      %837 = vmatprep.subr.mxu0 0.0
      %838 = vmatpush2.msra.mxu0 0.0
      %839 = vmatprep.subr.mxu0 0.0
      %840 = vmatpush2.msra.mxu0 0.0
      %841 = vmatprep.subr.mxu0 0.0
      %842 = vmatpush2.msra.mxu0 0.0
      %843 = vmatprep.subr.mxu0 0.0
      %844 = vmatpush2.msra.mxu0 0.0
      %845 = vmatprep.subr.mxu0 0.0
      %846 = vmatpush2.msra.mxu0 0.0
      %847 = vmatprep.subr.mxu0 0.0
      %848 = vmatpush2.msra.mxu0 0.0
      %849 = vmatprep.subr.mxu0 0.0
      %850 = vmatpush2.msra.mxu0 0.0
      %851 = vmatprep.subr.mxu0 0.0
      %852 = vmatpush2.msra.mxu0 0.0
      %853 = vmatprep.subr.mxu0 0.0
      %854 = vmatpush2.msra.mxu0 0.0
      %855 = vmatprep.subr.mxu0 0.0
      %856 = vmatpush2.msra.mxu0 0.0
      %857 = vmatprep.subr.mxu0 0.0
      %858 = vmatpush2.msra.mxu0 0.0
      %859 = vmatprep.subr.mxu0 0.0
      %860 = vmatpush2.msra.mxu0 0.0
      %861 = vmatprep.subr.mxu0 0.0
      %862 = vmatpush2.msra.mxu0 0.0
      %863 = vmatprep.subr.mxu0 0.0
      %864 = vmatpush2.msra.mxu0 0.0
      %865 = vmatprep.mubr.f32.mxu0 0.0
      %866 = vmatmul.mubr.f32.gmra.mxu0 %v799
      %v867 = vpop.f32.mrf.mxu0
      %v868 = vadd.f32 0.0, %v867
      %v869 = vpop.f32.mrf.mxu0
      %870 = vdwg.mxu0
      %v872 = vsel %vm299, %v665, 0
      %874 = vmatprep.subr.mxu0 0.0
      %875 = vmatpush1.msra.mxu0 0.0
      %876 = vmatprep.subr.mxu0 0.0
      %877 = vmatpush1.msra.mxu0 0.0
      %878 = vmatprep.subr.mxu0 0.0
      %879 = vmatpush1.msra.mxu0 0.0
      %880 = vmatprep.subr.mxu0 0.0
      %881 = vmatpush1.msra.mxu0 0.0
      %882 = vmatprep.subr.mxu0 0.0
      %883 = vmatpush1.msra.mxu0 0.0
      %884 = vmatprep.subr.mxu0 0.0
      %885 = vmatpush1.msra.mxu0 0.0
      %886 = vmatprep.subr.mxu0 0.0
      %887 = vmatpush1.msra.mxu0 0.0
      %888 = vmatprep.subr.mxu0 0.0
      %889 = vmatpush1.msra.mxu0 0.0
      %890 = vmatprep.subr.mxu0 0.0
      %891 = vmatpush1.msra.mxu0 0.0
      %892 = vmatprep.subr.mxu0 0.0
      %893 = vmatpush1.msra.mxu0 0.0
      %894 = vmatprep.subr.mxu0 0.0
      %895 = vmatpush1.msra.mxu0 0.0
      %896 = vmatprep.subr.mxu0 0.0
      %897 = vmatpush1.msra.mxu0 0.0
      %898 = vmatprep.subr.mxu0 0.0
      %899 = vmatpush1.msra.mxu0 0.0
      %900 = vmatprep.subr.mxu0 0.0
      %901 = vmatpush1.msra.mxu0 0.0
      %902 = vmatprep.subr.mxu0 0.0
      %903 = vmatpush1.msra.mxu0 0.0
      %904 = vmatprep.subr.mxu0 0.0
      %905 = vmatpush1.msra.mxu0 %v297
      %906 = vmatprep.subr.mxu0 0.0
      %907 = vmatpush2.msra.mxu0 0.0
      %908 = vmatprep.subr.mxu0 0.0
      %909 = vmatpush2.msra.mxu0 0.0
      %910 = vmatprep.subr.mxu0 0.0
      %911 = vmatpush2.msra.mxu0 0.0
      %912 = vmatprep.subr.mxu0 0.0
      %913 = vmatpush2.msra.mxu0 0.0
      %914 = vmatprep.subr.mxu0 0.0
      %915 = vmatpush2.msra.mxu0 0.0
      %916 = vmatprep.subr.mxu0 0.0
      %917 = vmatpush2.msra.mxu0 0.0
      %918 = vmatprep.subr.mxu0 0.0
      %919 = vmatpush2.msra.mxu0 0.0
      %920 = vmatprep.subr.mxu0 0.0
      %921 = vmatpush2.msra.mxu0 0.0
      %922 = vmatprep.subr.mxu0 0.0
      %923 = vmatpush2.msra.mxu0 0.0
      %924 = vmatprep.subr.mxu0 0.0
      %925 = vmatpush2.msra.mxu0 0.0
      %926 = vmatprep.subr.mxu0 0.0
      %927 = vmatpush2.msra.mxu0 0.0
      %928 = vmatprep.subr.mxu0 0.0
      %929 = vmatpush2.msra.mxu0 0.0
      %930 = vmatprep.subr.mxu0 0.0
      %931 = vmatpush2.msra.mxu0 0.0
      %932 = vmatprep.subr.mxu0 0.0
      %933 = vmatpush2.msra.mxu0 0.0
      %934 = vmatprep.subr.mxu0 0.0
      %935 = vmatpush2.msra.mxu0 0.0
      %936 = vmatprep.subr.mxu0 0.0
      %937 = vmatpush2.msra.mxu0 0.0
      %938 = vmatprep.mubr.f32.mxu0 0.0
      %939 = vmatmul.mubr.f32.gmra.mxu0 %v872
      %v940 = vpop.f32.mrf.mxu0
      %v941 = vadd.f32 0.0, %v940
      %v942 = vpop.f32.mrf.mxu0
      %943 = vdwg.mxu0
      %v945 = vsel %vm299, %v667, 0
      %947 = vmatprep.subr.mxu0 0.0
      %948 = vmatpush1.msra.mxu0 0.0
      %949 = vmatprep.subr.mxu0 0.0
      %950 = vmatpush1.msra.mxu0 0.0
      %951 = vmatprep.subr.mxu0 0.0
      %952 = vmatpush1.msra.mxu0 0.0
      %953 = vmatprep.subr.mxu0 0.0
      %954 = vmatpush1.msra.mxu0 0.0
      %955 = vmatprep.subr.mxu0 0.0
      %956 = vmatpush1.msra.mxu0 0.0
      %957 = vmatprep.subr.mxu0 0.0
      %958 = vmatpush1.msra.mxu0 0.0
      %959 = vmatprep.subr.mxu0 0.0
      %960 = vmatpush1.msra.mxu0 0.0
      %961 = vmatprep.subr.mxu0 0.0
      %962 = vmatpush1.msra.mxu0 0.0
      %963 = vmatprep.subr.mxu0 0.0
      %964 = vmatpush1.msra.mxu0 0.0
      %965 = vmatprep.subr.mxu0 0.0
      %966 = vmatpush1.msra.mxu0 0.0
      %967 = vmatprep.subr.mxu0 0.0
      %968 = vmatpush1.msra.mxu0 0.0
      %969 = vmatprep.subr.mxu0 0.0
      %970 = vmatpush1.msra.mxu0 0.0
      %971 = vmatprep.subr.mxu0 0.0
      %972 = vmatpush1.msra.mxu0 0.0
      %973 = vmatprep.subr.mxu0 0.0
      %974 = vmatpush1.msra.mxu0 0.0
      %975 = vmatprep.subr.mxu0 0.0
      %976 = vmatpush1.msra.mxu0 0.0
      %977 = vmatprep.subr.mxu0 0.0
      %978 = vmatpush1.msra.mxu0 %v298
      %979 = vmatprep.subr.mxu0 0.0
      %980 = vmatpush2.msra.mxu0 0.0
      %981 = vmatprep.subr.mxu0 0.0
      %982 = vmatpush2.msra.mxu0 0.0
      %983 = vmatprep.subr.mxu0 0.0
      %984 = vmatpush2.msra.mxu0 0.0
      %985 = vmatprep.subr.mxu0 0.0
      %986 = vmatpush2.msra.mxu0 0.0
      %987 = vmatprep.subr.mxu0 0.0
      %988 = vmatpush2.msra.mxu0 0.0
      %989 = vmatprep.subr.mxu0 0.0
      %990 = vmatpush2.msra.mxu0 0.0
      %991 = vmatprep.subr.mxu0 0.0
      %992 = vmatpush2.msra.mxu0 0.0
      %993 = vmatprep.subr.mxu0 0.0
      %994 = vmatpush2.msra.mxu0 0.0
      %995 = vmatprep.subr.mxu0 0.0
      %996 = vmatpush2.msra.mxu0 0.0
      %997 = vmatprep.subr.mxu0 0.0
      %998 = vmatpush2.msra.mxu0 0.0
      %999 = vmatprep.subr.mxu0 0.0
      %1000 = vmatpush2.msra.mxu0 0.0
      %1001 = vmatprep.subr.mxu0 0.0
      %1002 = vmatpush2.msra.mxu0 0.0
      %1003 = vmatprep.subr.mxu0 0.0
      %1004 = vmatpush2.msra.mxu0 0.0
      %1005 = vmatprep.subr.mxu0 0.0
      %1006 = vmatpush2.msra.mxu0 0.0
      %1007 = vmatprep.subr.mxu0 0.0
      %1008 = vmatpush2.msra.mxu0 0.0
      %1009 = vmatprep.subr.mxu0 0.0
      %1010 = vmatpush2.msra.mxu0 0.0
      %1011 = vmatprep.mubr.f32.mxu0 0.0
      %1012 = vmatmul.mubr.f32.gmra.mxu0 %v945
      %v1013 = vpop.f32.mrf.mxu0
      %v1014 = vadd.f32 0.0, %v1013
      %v1015 = vpop.f32.mrf.mxu0
      %1016 = vdwg.mxu0
      %v1017 = vadd.f32 %v721, %v795
      %v1018 = vadd.f32 %v722, %v868
      %v1019 = vadd.f32 %v723, %v941
      %v1020 = vadd.f32 %v724, %v1014
      %1021 = vst.msk [vmem:[#allocation4] sm:$0xff] %vm299, %v1017
      %1022 = vst.msk [vmem:[#allocation4 + $0x8] sm:$0xff] %vm299, %v1018
      %1023 = vst.msk [vmem:[#allocation4 + $0x10] sm:$0xff] %vm299, %v1019
      %1024 = vst.msk [vmem:[#allocation4 + $0x18] sm:$0xff] %vm299, %v1020
      %1025 = vst.msk [vmem:[#allocation2] sm:$0xff] %vm692, %v620
      %1026 = vst.msk [vmem:[#allocation2 + $0x8] sm:$0xff] %vm692, %v621
      %1027 = vst.msk [vmem:[#allocation2 + $0x10] sm:$0xff] %vm692, %v622
      %1028 = vst.msk [vmem:[#allocation2 + $0x18] sm:$0xff] %vm692, %v623
      // Predicated region
      $region37: #{multi_head_attention.4} parent=31 // pred_check
        %p1029 = pneg %p269
      $region38: #{multi_head_attention.4} parent=31 // pred_check_branch
        %1031 = sbr.rel (%p1029) target = $region40
      $region39: #{multi_head_attention.4} parent=31 // pred_region
        %v1032 = vld [vmem:[#allocation3] sm:$0xff]
        %v1033 = vld [vmem:[#allocation3 + $0x8] sm:$0xff]
        %v1034 = vld [vmem:[#allocation3 + $0x10] sm:$0xff]
        %v1035 = vld [vmem:[#allocation3 + $0x18] sm:$0xff]
        %vm1036 = vcmp.eq.f32.partialorder %v1032, 0.0
        %vm1037 = vcmp.eq.f32.partialorder %v1033, 0.0
        %vm1038 = vcmp.eq.f32.partialorder %v1034, 0.0
        %vm1039 = vcmp.eq.f32.partialorder %v1035, 0.0
        %v1040 = vsel %vm1036, 1.0, %v1032
        %v1041 = vsel %vm1037, 1.0, %v1033
        %v1042 = vsel %vm1038, 1.0, %v1034
        %v1043 = vsel %vm1039, 1.0, %v1035
        %v1044 = vrcp.pop %v1040
        %v1045 = vmul.f32 1.0, %v1044
        %v1046 = vrcp.pop %v1041
        %v1047 = vmul.f32 1.0, %v1046
        %v1048 = vrcp.pop %v1042
        %v1049 = vmul.f32 1.0, %v1048
        %v1050 = vrcp.pop %v1043
        %v1051 = vmul.f32 1.0, %v1050
        %v1052 = vld [vmem:[#allocation4] sm:$0xff]
        %v1053 = vld [vmem:[#allocation4 + $0x8] sm:$0xff]
        %v1054 = vld [vmem:[#allocation4 + $0x10] sm:$0xff]
        %v1055 = vld [vmem:[#allocation4 + $0x18] sm:$0xff]
        %1057 = vset.pattern.permute.xlu0 0
        %1058 = vperm.xlu0 %1057, %v1045
        %v1059 = vpop.permute.xlu0 %1058
        %1062 = vset.pattern.permute.xlu0 0
        %1063 = vperm.xlu0 %1062, %v1047
        %v1064 = vpop.permute.xlu0 %1063
        %1067 = vset.pattern.permute.xlu0 0
        %1068 = vperm.xlu0 %1067, %v1049
        %v1069 = vpop.permute.xlu0 %1068
        %1072 = vset.pattern.permute.xlu0 0
        %1073 = vperm.xlu0 %1072, %v1051
        %v1074 = vpop.permute.xlu0 %1073
        %v1076 = vmul.f32 %v1052, %v1059
        %v1077 = vmul.f32 %v1053, %v1064
        %v1078 = vmul.f32 %v1054, %v1069
        %v1079 = vmul.f32 %v1055, %v1074
        %v1080 = vcombine.low %v1076, %v1078
        %v1081 = vcombine.high %v1076, %v1078
        %v1083 = vunpack.c.l.s4 1983009808
        %v1084 = vunpack.c.0.s8 %v1083
        %v1085 = vlaneseq
        %v1086 = vshrl.u32 %v1085, 7
        %v1087 = vsub.s32 %v1084, %v1086
        %v1088 = vrot.slane %v1080, %v1087
        %v1090 = vunpack.c.l.s4 1983009808
        %v1091 = vunpack.c.0.s8 %v1090
        %v1092 = vlaneseq
        %v1093 = vshrl.u32 %v1092, 7
        %v1094 = vsub.s32 %v1091, %v1093
        %v1095 = vrot.slane %v1081, %v1094
        %v1096 = vcombine.low %v1077, %v1079
        %v1097 = vcombine.high %v1077, %v1079
        %v1099 = vunpack.c.l.s4 1983009808
        %v1100 = vunpack.c.0.s8 %v1099
        %v1101 = vlaneseq
        %v1102 = vshrl.u32 %v1101, 7
        %v1103 = vsub.s32 %v1100, %v1102
        %v1104 = vrot.slane %v1096, %v1103
        %v1106 = vunpack.c.l.s4 1983009808
        %v1107 = vunpack.c.0.s8 %v1106
        %v1108 = vlaneseq
        %v1109 = vshrl.u32 %v1108, 7
        %v1110 = vsub.s32 %v1107, %v1109
        %v1111 = vrot.slane %v1097, %v1110
        %v1112 = vcombine.low %v1088, %v1104
        %v1113 = vcombine.high %v1088, %v1104
        %v1115 = vunpack.c.l.s4 1934713408
        %v1116 = vunpack.c.0.s8 %v1115
        %v1117 = vlaneseq
        %v1118 = vshrl.u32 %v1117, 7
        %v1119 = vsub.s32 %v1116, %v1118
        %v1120 = vrot.slane %v1112, %v1119
        %v1122 = vunpack.c.l.s4 1934713408
        %v1123 = vunpack.c.0.s8 %v1122
        %v1124 = vlaneseq
        %v1125 = vshrl.u32 %v1124, 7
        %v1126 = vsub.s32 %v1123, %v1125
        %v1127 = vrot.slane %v1113, %v1126
        %v1128 = vcombine.low %v1095, %v1111
        %v1129 = vcombine.high %v1095, %v1111
        %v1131 = vunpack.c.l.s4 1934713408
        %v1132 = vunpack.c.0.s8 %v1131
        %v1133 = vlaneseq
        %v1134 = vshrl.u32 %v1133, 7
        %v1135 = vsub.s32 %v1132, %v1134
        %v1136 = vrot.slane %v1128, %v1135
        %v1138 = vunpack.c.l.s4 1934713408
        %v1139 = vunpack.c.0.s8 %v1138
        %v1140 = vlaneseq
        %v1141 = vshrl.u32 %v1140, 7
        %v1142 = vsub.s32 %v1139, %v1141
        %v1143 = vrot.slane %v1129, %v1142
        %v1144 = vcombine.high %v1120, 0.0
        %v1145 = vcombine.high %v1127, 0.0
        %v1146 = vcombine.high %v1136, 0.0
        %v1147 = vcombine.high %v1143, 0.0
        %v1148 = vcombine.low %v1120, %v1127
        %v1150 = vunpack.c.l.s4 1983009808
        %v1151 = vunpack.c.0.s8 %v1150
        %v1152 = vlaneseq
        %v1153 = vshrl.u32 %v1152, 7
        %v1154 = vsub.s32 %v1151, %v1153
        %v1155 = vrot.slane %v1148, %v1154
        %v1156 = vcombine.low %v1144, %v1145
        %v1158 = vunpack.c.l.s4 1983009808
        %v1159 = vunpack.c.0.s8 %v1158
        %v1160 = vlaneseq
        %v1161 = vshrl.u32 %v1160, 7
        %v1162 = vsub.s32 %v1159, %v1161
        %v1163 = vrot.slane %v1156, %v1162
        %v1164 = vcombine.low %v1136, %v1143
        %v1166 = vunpack.c.l.s4 1983009808
        %v1167 = vunpack.c.0.s8 %v1166
        %v1168 = vlaneseq
        %v1169 = vshrl.u32 %v1168, 7
        %v1170 = vsub.s32 %v1167, %v1169
        %v1171 = vrot.slane %v1164, %v1170
        %v1172 = vcombine.low %v1146, %v1147
        %v1174 = vunpack.c.l.s4 1983009808
        %v1175 = vunpack.c.0.s8 %v1174
        %v1176 = vlaneseq
        %v1177 = vshrl.u32 %v1176, 7
        %v1178 = vsub.s32 %v1175, %v1177
        %v1179 = vrot.slane %v1172, %v1178
        %v1180 = vcombine.low %v1155, %v1163
        %v1181 = vcombine.high %v1155, %v1163
        %v1183 = vunpack.c.l.s4 1934713408
        %v1184 = vunpack.c.0.s8 %v1183
        %v1185 = vlaneseq
        %v1186 = vshrl.u32 %v1185, 7
        %v1187 = vsub.s32 %v1184, %v1186
        %v1188 = vrot.slane %v1180, %v1187
        %v1190 = vunpack.c.l.s4 1934713408
        %v1191 = vunpack.c.0.s8 %v1190
        %v1192 = vlaneseq
        %v1193 = vshrl.u32 %v1192, 7
        %v1194 = vsub.s32 %v1191, %v1193
        %v1195 = vrot.slane %v1181, %v1194
        %v1196 = vcombine.low %v1171, %v1179
        %v1197 = vcombine.high %v1171, %v1179
        %v1199 = vunpack.c.l.s4 1934713408
        %v1200 = vunpack.c.0.s8 %v1199
        %v1201 = vlaneseq
        %v1202 = vshrl.u32 %v1201, 7
        %v1203 = vsub.s32 %v1200, %v1202
        %v1204 = vrot.slane %v1196, %v1203
        %v1206 = vunpack.c.l.s4 1934713408
        %v1207 = vunpack.c.0.s8 %v1206
        %v1208 = vlaneseq
        %v1209 = vshrl.u32 %v1208, 7
        %v1210 = vsub.s32 %v1207, %v1209
        %v1211 = vrot.slane %v1197, %v1210
        %v1212 = vcombine.low %v1188, %v1204
        %v1213 = vcombine.high %v1188, %v1204
        %v1214 = vcombine.low %v1195, %v1211
        %v1215 = vcombine.high %v1195, %v1211
        %1217 = vrot.lane.b32.xlu0 %v1213, 8
        %v1218 = vpop.permute.xlu0 %1217
        %1221 = vrot.lane.b32.xlu0 %v1214, 16
        %v1222 = vpop.permute.xlu0 %1221
        %1225 = vrot.lane.b32.xlu0 %v1215, 24
        %v1226 = vpop.permute.xlu0 %1225
        %v1228 = vsel %vm299, %v1212, %v1218
        %vm1229 = vcmask 130048
        %v1230 = vsel %vm1229, %v1228, %v1222
        %vm1231 = vcmask 195584
        %v1232 = vsel %vm1231, %v1230, %v1226
        %vm1233 = vcmask 261120
        %1234 = vst.msk [vmem:[%s268] sm:$0xff] %vm1233, %v1232
      $region40: #{multi_head_attention.4} parent=31 // pred_fallthru
        _
      %p1235 = scmp.lt.s32.totalorder %s19, 1
      %s1236 = scalar_select %p1235, %s19, 1
      %p1237 = scmp.lt.s32.totalorder %s20, 0
      %s1238 = scalar_select %p1237, %s20, 0
      %s1239 = sadd.s32 %s1238, %s1236
      %s1240 = smul.addr %s1239, 8
      %s1241 = scalar_lea.vmem %s3, %s1240
      // Predicated region
      $region41: #{multi_head_attention.4} parent=31 // pred_check
        %p1242 = pneg %p137
      $region42: #{multi_head_attention.4} parent=31 // pred_check_branch
        %1244 = sbr.rel (%p1242) target = $region44
      $region43: #{multi_head_attention.4} parent=31 // pred_region
        _
      $region44: #{multi_head_attention.4} parent=31 // pred_fallthru
        _
    $region32: #{multi_head_attention.4} parent=5 // pred_fallthru
      _
    %p1245 = scmp.le.s32.totalorder 2, %s9
    // Predicated region
    $region45: #{multi_head_attention.4} parent=5 // pred_check
      %p1246 = pneg %p1245
    $region46: #{multi_head_attention.4} parent=5 // pred_check_branch
      %1248 = sbr.rel (%p1246) target = $region48
    $region47: #{multi_head_attention.4} parent=5 // pred_region
      %s1249 = ssub.s32 %s9, 2
      // Predicated region
      $region49: #{multi_head_attention.4} parent=47 // pred_check
        %p1250 = pneg %p143
      $region50: #{multi_head_attention.4} parent=47 // pred_check_branch
        %1252 = sbr.rel (%p1250) target = $region52
      $region51: #{multi_head_attention.4} parent=47 // pred_region
        %p1253 = scmp.lt.s32.totalorder %s22, 1
        %s1254 = scalar_select %p1253, %s22, 1
        %p1255 = scmp.lt.s32.totalorder %s23, 0
        %s1256 = scalar_select %p1255, %s23, 0
        %s1257 = sadd.s32 %s1256, %s1254
        %s1258 = smul.addr %s1257, 8
        %s1259 = scalar_lea.vmem %s3, %s1258
      $region52: #{multi_head_attention.4} parent=47 // pred_fallthru
        _
    $region48: #{multi_head_attention.4} parent=5 // pred_fallthru
      _
  $region6: #{multi_head_attention.4} parent=0 // loop_footer
    %s13 = sadd.s32 1, %s9
  $region7: #{multi_head_attention.4} parent=0 // loop_footer_branch
    %8 = sbr.rel target = $region3
  $region8: #{multi_head_attention.4} parent=0 // loop_exit
    _

</llo_original>
